<compile_context>
chip_gen: v7x
topology: tpu7x:2x2x1
jax: 0.10.0
libtpu: 0.0.40
codegen_flags: <defaults>
</compile_context>

<pallas_src>
import jax
import jax.numpy as jnp
from jax.experimental import pallas as pl
from jax.experimental.pallas import tpu as pltpu

N_BITS = 8
N_LEVELS = 2 ** N_BITS          # sym=False -> 256 levels
QMAX = float(N_LEVELS - 1)


# ----------------------------------------------------------------------------
# Tiled single-pass min/max reduction (activation quantizer scale init).
# Produces (2, 128) per-lane partials; the final lane reduce happens inside the
# fused conv kernel (scalar/XLU slack), so no XLA ops sit between the two calls.
# ----------------------------------------------------------------------------
def _minmax_kernel(x_ref, o_ref):
    x = x_ref[...]                                        # (TR, 128) f32
    bmin = jnp.min(x, axis=0, keepdims=True)              # (1, 128)
    bmax = jnp.max(x, axis=0, keepdims=True)

    @pl.when(pl.program_id(0) == 0)
    def _():
        o_ref[0:1, :] = bmin
        o_ref[1:2, :] = bmax

    @pl.when(pl.program_id(0) != 0)
    def _():
        o_ref[0:1, :] = jnp.minimum(o_ref[0:1, :], bmin)
        o_ref[1:2, :] = jnp.maximum(o_ref[1:2, :], bmax)


def _pick_row_tile(rows):
    for tr in (512, 256, 128, 64, 32, 16, 8):
        if rows % tr == 0:
            return tr
    return None


def _minmax_partials(x):
    """(2, 128) f32: row 0 = per-lane min partials, row 1 = per-lane max partials."""
    xf = x.astype(jnp.float32)
    n = xf.size
    if n % 128 == 0:
        rows = n // 128
        tr = _pick_row_tile(rows)
        if tr is not None:
            x2 = xf.reshape(rows, 128)                    # lane-dense slab
            return pl.pallas_call(
                _minmax_kernel,
                out_shape=jax.ShapeDtypeStruct((2, 128), jnp.float32),
                grid=(rows // tr,),
                in_specs=[pl.BlockSpec((tr, 128), lambda i: (i, 0))],
                out_specs=pl.BlockSpec((2, 128), lambda i: (0, 0)),   # accumulator
                compiler_params=pltpu.CompilerParams(
                    dimension_semantics=("arbitrary",)),
            )(x2)
    # Oddly-sized tensors: plain XLA reduce, broadcast into the same interface.
    mn = jnp.min(xf)
    mx = jnp.max(xf)
    return jnp.stack([jnp.broadcast_to(mn, (128,)), jnp.broadcast_to(mx, (128,))])


# ----------------------------------------------------------------------------
# Fused kernel: act quant params + act fake-quant + zero-pad scatter
#               + 9 accumulated tap matmuls + dequant + bias + compaction.
# One grid step == B batch images.
# ----------------------------------------------------------------------------
def _pick_image_tile(n_images, target=8):
    """Largest divisor of N <= target, keeping >= 2 grid steps when N >= 2 (v7x 2xTC)."""
    best = 1
    for b in range(1, min(target, n_images) + 1):
        if n_images % b == 0 and (n_images // b >= 2 or n_images == 1):
            best = b
    return best


def _make_fused_kernel(B, Cin, Cout, H, W, KH, KW, pad):
    Hp, Wp = H + 2 * pad, W + 2 * pad
    Ho, Wo = Hp - KH + 1, Wp - KW + 1
    MW = Ho * Wp                      # wide per-image column count ((Wp-Wo) junk/row)
    Lflat = Hp * Wp                   # flattened zero-padded per-image length
    Wtap = (B - 1) * Lflat + MW       # one tap matmul spans all B images at once
    Ltot = -(-(B * Lflat + (KW - 1)) // 128) * 128   # + tap overhang, 128-rounded

    def kernel(amm_ref, x_ref, w_ref, b_ref, wd_ref, o_ref, zf_ref):
        # --- UniformAffineQuantizer.init_quantization_scale ('max', asym, per-tensor):
        #     delta from RAW min/max, zero_point from min(x_min, 0)  (matches source).
        a_min_raw = jnp.min(amm_ref[0:1, :])
        a_max_raw = jnp.max(amm_ref[1:2, :])
        a_delta = jnp.maximum((a_max_raw - a_min_raw) / (N_LEVELS - 1), 1e-8)
        a_zp = jnp.round(-jnp.minimum(a_min_raw, 0.0) / a_delta)
        a_inv = 1.0 / a_delta                      # multiply instead of per-elem divide
        scale = a_delta * wd_ref[0]                # combined dequant scale a_d * w_d

        # --- activation fake-quant, integer domain (q - zp): one vectorized pass,
        #     result stays in vregs (no scratch round trip).  Exact in bf16.
        x = x_ref[...]                                             # (B, Cin, H*W) f32
        xq = (jnp.clip(jnp.round(x * a_inv) + a_zp, 0.0, QMAX) - a_zp
              ).astype(zf_ref.dtype)

        # --- zero padding fused with the scatter into the flattened padded buffer.
        #     Integer-domain 0 dequantizes to exactly 0.0, identical to conv zero-pad.
        zf_ref[...] = jnp.zeros_like(zf_ref)
        for b in range(B):
            for i in range(H):
                dst = b * Lflat + (i + pad) * Wp + pad
                zf_ref[:, dst:dst + W] = xq[b, :, i * W:(i + 1) * W]

        # --- conv as KH*KW accumulated tap matmuls (no im2col scratch).
        #     Tap (kh, kw) of image b, output (h, w) reads zf at
        #     b*Lflat + (h+kh)*Wp + (w+kw) == s + j with j the output column index.
        acc = None
        for kh in range(KH):
            for kw in range(KW):
                t = kh * KW + kw
                s = kh * Wp + kw
                part = jnp.dot(w_ref[:, t * Cin:(t + 1) * Cin],
                               zf_ref[:, s:s + Wtap],
                               preferred_element_type=jnp.float32)   # (Cout, Wtap)
                acc = part if acc is None else acc + part

        # --- dequant + bias (one pass), then compact the (Wp-Wo) junk columns away
        #     while storing: output block last dim is Ho*Wo (lane-dense HBM stores).
        accd = acc * scale + b_ref[...]                              # (Cout, Wtap)
        for b in range(B):
            base = b * Lflat
            for h in range(Ho):
                col = base + h * Wp
                o_ref[b, :, h * Wo:(h + 1) * Wo] = accd[:, col:col + Wo]

    geom = dict(Hp=Hp, Wp=Wp, Ho=Ho, Wo=Wo, Lflat=Lflat, Wtap=Wtap, Ltot=Ltot)
    return kernel, geom


# ----------------------------------------------------------------------------
# QuantModule.forward (weight_quant=True, act_quant=True, split=0, sd=False).
# ----------------------------------------------------------------------------
def quant_module_forward(x, weight, bias, padding=1):
    N, Cin, H, W = x.shape
    Cout, Cin_w, KH, KW = weight.shape
    assert Cin_w == Cin

    # Activation min/max: single-pass tiled Pallas reduction (per-lane partials).
    amm = _minmax_partials(x)                                        # (2, 128)

    # Weight fake-quant hoisted out of the kernel (grid-invariant, one-time in the
    # PyTorch module).  Keep integer-domain values (exact in bf16); pass w_delta only.
    w_min = jnp.min(weight)
    w_max = jnp.max(weight)
    w_delta = jnp.maximum((w_max - w_min) / (N_LEVELS - 1), 1e-8)
    w_zp = jnp.round(-jnp.minimum(w_min, 0.0) / w_delta)
    w_int = jnp.clip(jnp.round(weight / w_delta) + w_zp, 0.0, QMAX) - w_zp
    # [o, (kh, kw, c)] so tap t = kh*KW+kw selects columns [t*Cin, (t+1)*Cin).
    w_full = jnp.transpose(w_int, (0, 2, 3, 1)).reshape(Cout, KH * KW * Cin)
    w_full = w_full.astype(jnp.bfloat16)
    wd = jnp.reshape(w_delta, (1,)).astype(jnp.float32)
    b2 = bias.reshape(Cout, 1).astype(jnp.float32)

    B = _pick_image_tile(N)
    kernel, geom = _make_fused_kernel(B, Cin, Cout, H, W, KH, KW, padding)
    Ho, Wo = geom["Ho"], geom["Wo"]

    x_flat = x.reshape(N, Cin, H * W).astype(jnp.float32)

    out3 = pl.pallas_call(
        kernel,
        out_shape=jax.ShapeDtypeStruct((N, Cout, Ho * Wo), jnp.float32),
        grid=(N // B,),
        in_specs=[
            pl.BlockSpec((2, 128), lambda n: (0, 0)),                 # min/max partials
            pl.BlockSpec((B, Cin, H * W), lambda n: (n, 0, 0)),       # activations
            pl.BlockSpec((Cout, KH * KW * Cin), lambda n: (0, 0)),    # int-domain wgt
            pl.BlockSpec((Cout, 1), lambda n: (0, 0)),                # bias
            pl.BlockSpec(memory_space=pltpu.MemorySpace.SMEM),        # w_delta scalar
        ],
        out_specs=pl.BlockSpec((B, Cout, Ho * Wo), lambda n: (n, 0, 0)),
        scratch_shapes=[
            pltpu.VMEM((Cin, geom["Ltot"]), jnp.bfloat16),   # zero-padded flat images
        ],
        compiler_params=pltpu.CompilerParams(
            dimension_semantics=("parallel",),               # images are independent
        ),
    )(amm, x_flat, w_full, b2, wd)

    # Only remaining wrapper op: a row-major split of the minor dim back to NCHW
    # (junk columns were already compacted away in-kernel).
    return out3.reshape(N, Cout, Ho, Wo)


# ----------------------------------------------------------------------------
# Pure-JAX reference with the module's semantics (for verification).
# The activation path mirrors the kernel's x * (1/delta) rounding (within 1 ulp of
# PyTorch's x / delta; can only differ exactly at a rounding boundary).
# ----------------------------------------------------------------------------
def reference_forward(x, weight, bias, padding=1):
    a_min = jnp.min(x)
    a_max = jnp.max(x)
    a_delta = jnp.maximum((a_max - a_min) / (N_LEVELS - 1), 1e-8)
    a_zp = jnp.round(-jnp.minimum(a_min, 0.0) / a_delta)
    xq = (jnp.clip(jnp.round(x * (1.0 / a_delta)) + a_zp, 0.0, QMAX) - a_zp) * a_delta

    w_min = jnp.min(weight)
    w_max = jnp.max(weight)
    w_delta = jnp.maximum((w_max - w_min) / (N_LEVELS - 1), 1e-8)
    w_zp = jnp.round(-jnp.minimum(w_min, 0.0) / w_delta)
    wq = (jnp.clip(jnp.round(weight / w_delta) + w_zp, 0.0, QMAX) - w_zp) * w_delta

    out = jax.lax.conv_general_dilated(
        xq, wq, window_strides=(1, 1),
        padding=[(padding, padding), (padding, padding)],
        dimension_numbers=("NCHW", "OIHW", "NCHW"),
        precision=jax.lax.Precision.HIGHEST)
    return out + bias.reshape(1, -1, 1, 1)    # StraightThrough == identity


if __name__ == "__main__":
    key = jax.random.PRNGKey(0)
    kx, kw_key, kb = jax.random.split(key, 3)

    N, Cin, H, W = 2, 4, 16, 16
    Cout, KH, KW = 8, 3, 3
    padding = 1

    x = jax.random.normal(kx, (N, Cin, H, W), dtype=jnp.float32)
    weight = jax.random.normal(kw_key, (Cout, Cin, KH, KW), dtype=jnp.float32) * 0.1
    bias = jax.random.normal(kb, (Cout,), dtype=jnp.float32) * 0.1

    fwd = jax.jit(quant_module_forward, static_argnames=("padding",))
    out = jax.block_until_ready(fwd(x, weight, bias, padding=padding))

    ref = reference_forward(x, weight, bias, padding=padding)
    assert out.shape == ref.shape == (N, Cout, H, W)
    max_diff = float(jnp.max(jnp.abs(out - ref)))
    assert jnp.allclose(out, ref, atol=1e-4, rtol=1e-4), f"max abs diff = {max_diff}"

    print("KERNEL_OK")
</pallas_src>

<mosaic_0001>
module attributes {stable_mosaic.version = 11 : i64} {
  func.func @_minmax_kernel(%arg0: i32, %arg1: memref<16x128xf32, #tpu.memory_space<vmem>>, %arg2: memref<2x128xf32, #tpu.memory_space<vmem>>) attributes {dimension_semantics = [#tpu.dimension_semantics<arbitrary>], iteration_bounds = array<i64: 1>, scalar_prefetch = 0 : i64, scratch_operands = 0 : i64, tpu.core_type = #tpu.core_type<tc>, window_params = [{transform_indices = @transform_0, window_bounds = array<i64: 16, 128>}, {pipeline_mode = #tpu.pipeline_mode<synchronous>, transform_indices = @transform_1, window_bounds = array<i64: 2, 128>}]} {
    %c0 = arith.constant 0 : index
    %c0_0 = arith.constant 0 : index
    %0 = vector.load %arg1[%c0, %c0_0] : memref<16x128xf32, #tpu.memory_space<vmem>>, vector<16x128xf32>
    %cst = arith.constant dense<0x7F800000> : vector<128xf32>
    %1 = vector.multi_reduction <minimumf>, %0, %cst [0] : vector<16x128xf32> to vector<128xf32>
    %2 = vector.shape_cast %1 : vector<128xf32> to vector<1x128xf32>
    %cst_1 = arith.constant dense<0xFF800000> : vector<128xf32>
    %3 = vector.multi_reduction <maximumf>, %0, %cst_1 [0] : vector<16x128xf32> to vector<128xf32>
    %4 = vector.shape_cast %3 : vector<128xf32> to vector<1x128xf32>
    %c0_i32 = arith.constant 0 : i32
    %5 = arith.cmpi eq, %arg0, %c0_i32 : i32
    %6 = arith.extui %5 : i1 to i32
    %c0_i32_2 = arith.constant 0 : i32
    %7 = arith.cmpi ne, %6, %c0_i32_2 : i32
    scf.if %7 {
      %c0_5 = arith.constant 0 : index
      %c0_6 = arith.constant 0 : index
      %11 = vector.load %arg2[%c0_5, %c0_6] : memref<2x128xf32, #tpu.memory_space<vmem>>, vector<1x128xf32>
      tpu.vector_store %arg2[%c0_5, %c0_6], %2 {strides = array<i32>} : memref<2x128xf32, #tpu.memory_space<vmem>>, vector<1x128xf32>,
      %c1 = arith.constant 1 : index
      %c0_7 = arith.constant 0 : index
      %12 = vector.load %arg2[%c1, %c0_7] : memref<2x128xf32, #tpu.memory_space<vmem>>, vector<1x128xf32>
      tpu.vector_store %arg2[%c1, %c0_7], %4 {strides = array<i32>} : memref<2x128xf32, #tpu.memory_space<vmem>>, vector<1x128xf32>,
    } else {
    }
    %c0_i32_3 = arith.constant 0 : i32
    %8 = arith.cmpi ne, %arg0, %c0_i32_3 : i32
    %9 = arith.extui %8 : i1 to i32
    %c0_i32_4 = arith.constant 0 : i32
    %10 = arith.cmpi ne, %9, %c0_i32_4 : i32
    scf.if %10 {
      %c0_5 = arith.constant 0 : index
      %c0_6 = arith.constant 0 : index
      %11 = vector.load %arg2[%c0_5, %c0_6] : memref<2x128xf32, #tpu.memory_space<vmem>>, vector<1x128xf32>
      %12 = arith.minimumf %11, %2 : vector<1x128xf32>
      %c0_7 = arith.constant 0 : index
      %c0_8 = arith.constant 0 : index
      %13 = vector.load %arg2[%c0_7, %c0_8] : memref<2x128xf32, #tpu.memory_space<vmem>>, vector<1x128xf32>
      tpu.vector_store %arg2[%c0_7, %c0_8], %12 {strides = array<i32>} : memref<2x128xf32, #tpu.memory_space<vmem>>, vector<1x128xf32>,
      %c1 = arith.constant 1 : index
      %c0_9 = arith.constant 0 : index
      %14 = vector.load %arg2[%c1, %c0_9] : memref<2x128xf32, #tpu.memory_space<vmem>>, vector<1x128xf32>
      %15 = arith.maximumf %14, %4 : vector<1x128xf32>
      %c1_10 = arith.constant 1 : index
      %c0_11 = arith.constant 0 : index
      %16 = vector.load %arg2[%c1_10, %c0_11] : memref<2x128xf32, #tpu.memory_space<vmem>>, vector<1x128xf32>
      tpu.vector_store %arg2[%c1_10, %c0_11], %15 {strides = array<i32>} : memref<2x128xf32, #tpu.memory_space<vmem>>, vector<1x128xf32>,
    } else {
    }
    return
  }
  func.func @transform_0(%arg0: i32) -> (i32, i32) {
    %c0_i32 = arith.constant 0 : i32
    %c0_i32_0 = arith.constant 0 : i32
    return %arg0, %c0_i32 : i32, i32
  }
  func.func @transform_1(%arg0: i32) -> (i32, i32) {
    %c0_i32 = arith.constant 0 : i32
    %c0_i32_0 = arith.constant 0 : i32
    %c0_i32_1 = arith.constant 0 : i32
    return %c0_i32, %c0_i32_0 : i32, i32
  }
}

module attributes {stable_mosaic.version = 11 : i64} {
  func.func @kernel(%arg0: i32, %arg1: memref<2x128xf32, #tpu.memory_space<vmem>>, %arg2: memref<1x4x256xf32, #tpu.memory_space<vmem>>, %arg3: memref<8x36xbf16, #tpu.memory_space<vmem>>, %arg4: memref<8x1xf32, #tpu.memory_space<vmem>>, %arg5: memref<1xf32, #tpu.memory_space<smem>>, %arg6: memref<1x8x256xf32, #tpu.memory_space<vmem>>, %arg7: memref<4x384xbf16, #tpu.memory_space<vmem>>) attributes {dimension_semantics = [#tpu.dimension_semantics<parallel>], iteration_bounds = array<i64: 2>, scalar_prefetch = 0 : i64, scratch_operands = 1 : i64, tpu.core_type = #tpu.core_type<tc>, window_params = [{pipeline_mode = #tpu.pipeline_mode<synchronous>, transform_indices = @transform_0, window_bounds = array<i64: 2, 128>}, {transform_indices = @transform_1, window_bounds = array<i64: 1, 4, 256>}, {pipeline_mode = #tpu.pipeline_mode<synchronous>, transform_indices = @transform_2, window_bounds = array<i64: 8, 36>}, {pipeline_mode = #tpu.pipeline_mode<synchronous>, transform_indices = @transform_3, window_bounds = array<i64: 8, 1>}, {transform_indices = @transform_4, window_bounds = array<i64: 1>}, {transform_indices = @transform_5, window_bounds = array<i64: 1, 8, 256>}]} {
    %c0 = arith.constant 0 : index
    %c0_0 = arith.constant 0 : index
    %0 = vector.load %arg1[%c0, %c0_0] : memref<2x128xf32, #tpu.memory_space<vmem>>, vector<1x128xf32>
    %1 = vector.shape_cast %0 : vector<1x128xf32> to vector<1x1x128xf32>
    %cst = arith.constant dense<0x7F800000> : vector<1xf32>
    %2 = vector.multi_reduction <minimumf>, %1, %cst [1, 2] : vector<1x1x128xf32> to vector<1xf32>
    %3 = vector.shape_cast %2 : vector<1xf32> to vector<1x1x1xf32>
    %4 = vector.extract %3[0, 0, 0] : f32 from vector<1x1x1xf32>
    %c1 = arith.constant 1 : index
    %c0_1 = arith.constant 0 : index
    %5 = vector.load %arg1[%c1, %c0_1] : memref<2x128xf32, #tpu.memory_space<vmem>>, vector<1x128xf32>
    %6 = vector.shape_cast %5 : vector<1x128xf32> to vector<1x1x128xf32>
    %cst_2 = arith.constant dense<0xFF800000> : vector<1xf32>
    %7 = vector.multi_reduction <maximumf>, %6, %cst_2 [1, 2] : vector<1x1x128xf32> to vector<1xf32>
    %8 = vector.shape_cast %7 : vector<1xf32> to vector<1x1x1xf32>
    %9 = vector.extract %8[0, 0, 0] : f32 from vector<1x1x1xf32>
    %10 = arith.subf %9, %4 : f32
    %cst_3 = arith.constant 2.550000e+02 : f32
    %11 = arith.divf %10, %cst_3 : f32
    %cst_4 = arith.constant 9.99999993E-9 : f32
    %12 = arith.maximumf %11, %cst_4 : f32
    %cst_5 = arith.constant 0.000000e+00 : f32
    %13 = arith.minimumf %4, %cst_5 : f32
    %cst_6 = arith.constant 0.000000e+00 : f32
    %14 = arith.subf %cst_6, %13 : f32
    %15 = arith.divf %14, %12 : f32
    %16 = math.roundeven %15 : f32
    %cst_7 = arith.constant 1.000000e+00 : f32
    %17 = arith.divf %cst_7, %12 : f32
    %c0_8 = arith.constant 0 : index
    %18 = memref.load %arg5[%c0_8] : memref<1xf32, #tpu.memory_space<smem>>
    %19 = arith.mulf %12, %18 : f32
    %c0_9 = arith.constant 0 : index
    %c0_10 = arith.constant 0 : index
    %c0_11 = arith.constant 0 : index
    %20 = vector.load %arg2[%c0_9, %c0_10, %c0_11] : memref<1x4x256xf32, #tpu.memory_space<vmem>>, vector<1x4x256xf32>
    %21 = vector.broadcast %17 : f32 to vector<1x4x256xf32>
    %22 = arith.mulf %20, %21 : vector<1x4x256xf32>
    %23 = math.roundeven %22 : vector<1x4x256xf32>
    %24 = vector.broadcast %16 : f32 to vector<1x4x256xf32>
    %25 = arith.addf %23, %24 : vector<1x4x256xf32>
    %cst_12 = arith.constant 0.000000e+00 : f32
    %cst_13 = arith.constant 2.550000e+02 : f32
    %26 = vector.broadcast %cst_12 : f32 to vector<1x4x256xf32>
    %27 = arith.maximumf %26, %25 : vector<1x4x256xf32>
    %28 = vector.broadcast %cst_13 : f32 to vector<1x4x256xf32>
    %29 = arith.minimumf %28, %27 : vector<1x4x256xf32>
    %30 = vector.broadcast %16 : f32 to vector<1x4x256xf32>
    %31 = arith.subf %29, %30 : vector<1x4x256xf32>
    %32 = arith.truncf %31 : vector<1x4x256xf32> to vector<1x4x256xbf16>
    %cst_14 = arith.constant 0.000000e+00 : bf16
    %33 = vector.broadcast %cst_14 : bf16 to vector<4x384xbf16>
    %c0_15 = arith.constant 0 : index
    %c0_16 = arith.constant 0 : index
    %34 = vector.load %arg7[%c0_15, %c0_16] : memref<4x384xbf16, #tpu.memory_space<vmem>>, vector<4x384xbf16>
    tpu.vector_store %arg7[%c0_15, %c0_16], %33 {strides = array<i32>} : memref<4x384xbf16, #tpu.memory_space<vmem>>, vector<4x384xbf16>,
    %35 = vector.extract_strided_slice %32 {offsets = [0, 0, 0], sizes = [1, 4, 16], strides = [1, 1, 1]} : vector<1x4x256xbf16> to vector<1x4x16xbf16>
    %36 = vector.shape_cast %35 : vector<1x4x16xbf16> to vector<4x16xbf16>
    %c0_17 = arith.constant 0 : index
    %c19 = arith.constant 19 : index
    %37 = vector.load %arg7[%c0_17, %c19] : memref<4x384xbf16, #tpu.memory_space<vmem>>, vector<4x16xbf16>
    tpu.vector_store %arg7[%c0_17, %c19], %36 {strides = array<i32>} : memref<4x384xbf16, #tpu.memory_space<vmem>>, vector<4x16xbf16>,
    %38 = vector.extract_strided_slice %32 {offsets = [0, 0, 16], sizes = [1, 4, 16], strides = [1, 1, 1]} : vector<1x4x256xbf16> to vector<1x4x16xbf16>
    %39 = vector.shape_cast %38 : vector<1x4x16xbf16> to vector<4x16xbf16>
    %c0_18 = arith.constant 0 : index
    %c37 = arith.constant 37 : index
    %40 = vector.load %arg7[%c0_18, %c37] : memref<4x384xbf16, #tpu.memory_space<vmem>>, vector<4x16xbf16>
    tpu.vector_store %arg7[%c0_18, %c37], %39 {strides = array<i32>} : memref<4x384xbf16, #tpu.memory_space<vmem>>, vector<4x16xbf16>,
    %41 = vector.extract_strided_slice %32 {offsets = [0, 0, 32], sizes = [1, 4, 16], strides = [1, 1, 1]} : vector<1x4x256xbf16> to vector<1x4x16xbf16>
    %42 = vector.shape_cast %41 : vector<1x4x16xbf16> to vector<4x16xbf16>
    %c0_19 = arith.constant 0 : index
    %c55 = arith.constant 55 : index
    %43 = vector.load %arg7[%c0_19, %c55] : memref<4x384xbf16, #tpu.memory_space<vmem>>, vector<4x16xbf16>
    tpu.vector_store %arg7[%c0_19, %c55], %42 {strides = array<i32>} : memref<4x384xbf16, #tpu.memory_space<vmem>>, vector<4x16xbf16>,
    %44 = vector.extract_strided_slice %32 {offsets = [0, 0, 48], sizes = [1, 4, 16], strides = [1, 1, 1]} : vector<1x4x256xbf16> to vector<1x4x16xbf16>
    %45 = vector.shape_cast %44 : vector<1x4x16xbf16> to vector<4x16xbf16>
    %c0_20 = arith.constant 0 : index
    %c73 = arith.constant 73 : index
    %46 = vector.load %arg7[%c0_20, %c73] : memref<4x384xbf16, #tpu.memory_space<vmem>>, vector<4x16xbf16>
    tpu.vector_store %arg7[%c0_20, %c73], %45 {strides = array<i32>} : memref<4x384xbf16, #tpu.memory_space<vmem>>, vector<4x16xbf16>,
    %47 = vector.extract_strided_slice %32 {offsets = [0, 0, 64], sizes = [1, 4, 16], strides = [1, 1, 1]} : vector<1x4x256xbf16> to vector<1x4x16xbf16>
    %48 = vector.shape_cast %47 : vector<1x4x16xbf16> to vector<4x16xbf16>
    %c0_21 = arith.constant 0 : index
    %c91 = arith.constant 91 : index
    %49 = vector.load %arg7[%c0_21, %c91] : memref<4x384xbf16, #tpu.memory_space<vmem>>, vector<4x16xbf16>
    tpu.vector_store %arg7[%c0_21, %c91], %48 {strides = array<i32>} : memref<4x384xbf16, #tpu.memory_space<vmem>>, vector<4x16xbf16>,
    %50 = vector.extract_strided_slice %32 {offsets = [0, 0, 80], sizes = [1, 4, 16], strides = [1, 1, 1]} : vector<1x4x256xbf16> to vector<1x4x16xbf16>
    %51 = vector.shape_cast %50 : vector<1x4x16xbf16> to vector<4x16xbf16>
    %c0_22 = arith.constant 0 : index
    %c109 = arith.constant 109 : index
    %52 = vector.load %arg7[%c0_22, %c109] : memref<4x384xbf16, #tpu.memory_space<vmem>>, vector<4x16xbf16>
    tpu.vector_store %arg7[%c0_22, %c109], %51 {strides = array<i32>} : memref<4x384xbf16, #tpu.memory_space<vmem>>, vector<4x16xbf16>,
    %53 = vector.extract_strided_slice %32 {offsets = [0, 0, 96], sizes = [1, 4, 16], strides = [1, 1, 1]} : vector<1x4x256xbf16> to vector<1x4x16xbf16>
    %54 = vector.shape_cast %53 : vector<1x4x16xbf16> to vector<4x16xbf16>
    %c0_23 = arith.constant 0 : index
    %c127 = arith.constant 127 : index
    %55 = vector.load %arg7[%c0_23, %c127] : memref<4x384xbf16, #tpu.memory_space<vmem>>, vector<4x16xbf16>
    tpu.vector_store %arg7[%c0_23, %c127], %54 {strides = array<i32>} : memref<4x384xbf16, #tpu.memory_space<vmem>>, vector<4x16xbf16>,
    %56 = vector.extract_strided_slice %32 {offsets = [0, 0, 112], sizes = [1, 4, 16], strides = [1, 1, 1]} : vector<1x4x256xbf16> to vector<1x4x16xbf16>
    %57 = vector.shape_cast %56 : vector<1x4x16xbf16> to vector<4x16xbf16>
    %c0_24 = arith.constant 0 : index
    %c145 = arith.constant 145 : index
    %58 = vector.load %arg7[%c0_24, %c145] : memref<4x384xbf16, #tpu.memory_space<vmem>>, vector<4x16xbf16>
    tpu.vector_store %arg7[%c0_24, %c145], %57 {strides = array<i32>} : memref<4x384xbf16, #tpu.memory_space<vmem>>, vector<4x16xbf16>,
    %59 = vector.extract_strided_slice %32 {offsets = [0, 0, 128], sizes = [1, 4, 16], strides = [1, 1, 1]} : vector<1x4x256xbf16> to vector<1x4x16xbf16>
    %60 = vector.shape_cast %59 : vector<1x4x16xbf16> to vector<4x16xbf16>
    %c0_25 = arith.constant 0 : index
    %c163 = arith.constant 163 : index
    %61 = vector.load %arg7[%c0_25, %c163] : memref<4x384xbf16, #tpu.memory_space<vmem>>, vector<4x16xbf16>
    tpu.vector_store %arg7[%c0_25, %c163], %60 {strides = array<i32>} : memref<4x384xbf16, #tpu.memory_space<vmem>>, vector<4x16xbf16>,
    %62 = vector.extract_strided_slice %32 {offsets = [0, 0, 144], sizes = [1, 4, 16], strides = [1, 1, 1]} : vector<1x4x256xbf16> to vector<1x4x16xbf16>
    %63 = vector.shape_cast %62 : vector<1x4x16xbf16> to vector<4x16xbf16>
    %c0_26 = arith.constant 0 : index
    %c181 = arith.constant 181 : index
    %64 = vector.load %arg7[%c0_26, %c181] : memref<4x384xbf16, #tpu.memory_space<vmem>>, vector<4x16xbf16>
    tpu.vector_store %arg7[%c0_26, %c181], %63 {strides = array<i32>} : memref<4x384xbf16, #tpu.memory_space<vmem>>, vector<4x16xbf16>,
    %65 = vector.extract_strided_slice %32 {offsets = [0, 0, 160], sizes = [1, 4, 16], strides = [1, 1, 1]} : vector<1x4x256xbf16> to vector<1x4x16xbf16>
    %66 = vector.shape_cast %65 : vector<1x4x16xbf16> to vector<4x16xbf16>
    %c0_27 = arith.constant 0 : index
    %c199 = arith.constant 199 : index
    %67 = vector.load %arg7[%c0_27, %c199] : memref<4x384xbf16, #tpu.memory_space<vmem>>, vector<4x16xbf16>
    tpu.vector_store %arg7[%c0_27, %c199], %66 {strides = array<i32>} : memref<4x384xbf16, #tpu.memory_space<vmem>>, vector<4x16xbf16>,
    %68 = vector.extract_strided_slice %32 {offsets = [0, 0, 176], sizes = [1, 4, 16], strides = [1, 1, 1]} : vector<1x4x256xbf16> to vector<1x4x16xbf16>
    %69 = vector.shape_cast %68 : vector<1x4x16xbf16> to vector<4x16xbf16>
    %c0_28 = arith.constant 0 : index
    %c217 = arith.constant 217 : index
    %70 = vector.load %arg7[%c0_28, %c217] : memref<4x384xbf16, #tpu.memory_space<vmem>>, vector<4x16xbf16>
    tpu.vector_store %arg7[%c0_28, %c217], %69 {strides = array<i32>} : memref<4x384xbf16, #tpu.memory_space<vmem>>, vector<4x16xbf16>,
    %71 = vector.extract_strided_slice %32 {offsets = [0, 0, 192], sizes = [1, 4, 16], strides = [1, 1, 1]} : vector<1x4x256xbf16> to vector<1x4x16xbf16>
    %72 = vector.shape_cast %71 : vector<1x4x16xbf16> to vector<4x16xbf16>
    %c0_29 = arith.constant 0 : index
    %c235 = arith.constant 235 : index
    %73 = vector.load %arg7[%c0_29, %c235] : memref<4x384xbf16, #tpu.memory_space<vmem>>, vector<4x16xbf16>
    tpu.vector_store %arg7[%c0_29, %c235], %72 {strides = array<i32>} : memref<4x384xbf16, #tpu.memory_space<vmem>>, vector<4x16xbf16>,
    %74 = vector.extract_strided_slice %32 {offsets = [0, 0, 208], sizes = [1, 4, 16], strides = [1, 1, 1]} : vector<1x4x256xbf16> to vector<1x4x16xbf16>
    %75 = vector.shape_cast %74 : vector<1x4x16xbf16> to vector<4x16xbf16>
    %c0_30 = arith.constant 0 : index
    %c253 = arith.constant 253 : index
    %76 = vector.load %arg7[%c0_30, %c253] : memref<4x384xbf16, #tpu.memory_space<vmem>>, vector<4x16xbf16>
    tpu.vector_store %arg7[%c0_30, %c253], %75 {strides = array<i32>} : memref<4x384xbf16, #tpu.memory_space<vmem>>, vector<4x16xbf16>,
    %77 = vector.extract_strided_slice %32 {offsets = [0, 0, 224], sizes = [1, 4, 16], strides = [1, 1, 1]} : vector<1x4x256xbf16> to vector<1x4x16xbf16>
    %78 = vector.shape_cast %77 : vector<1x4x16xbf16> to vector<4x16xbf16>
    %c0_31 = arith.constant 0 : index
    %c271 = arith.constant 271 : index
    %79 = vector.load %arg7[%c0_31, %c271] : memref<4x384xbf16, #tpu.memory_space<vmem>>, vector<4x16xbf16>
    tpu.vector_store %arg7[%c0_31, %c271], %78 {strides = array<i32>} : memref<4x384xbf16, #tpu.memory_space<vmem>>, vector<4x16xbf16>,
    %80 = vector.extract_strided_slice %32 {offsets = [0, 0, 240], sizes = [1, 4, 16], strides = [1, 1, 1]} : vector<1x4x256xbf16> to vector<1x4x16xbf16>
    %81 = vector.shape_cast %80 : vector<1x4x16xbf16> to vector<4x16xbf16>
    %c0_32 = arith.constant 0 : index
    %c289 = arith.constant 289 : index
    %82 = vector.load %arg7[%c0_32, %c289] : memref<4x384xbf16, #tpu.memory_space<vmem>>, vector<4x16xbf16>
    tpu.vector_store %arg7[%c0_32, %c289], %81 {strides = array<i32>} : memref<4x384xbf16, #tpu.memory_space<vmem>>, vector<4x16xbf16>,
    %c0_33 = arith.constant 0 : index
    %c0_34 = arith.constant 0 : index
    %83 = vector.load %arg3[%c0_33, %c0_34] : memref<8x36xbf16, #tpu.memory_space<vmem>>, vector<8x4xbf16>
    %c0_35 = arith.constant 0 : index
    %c0_36 = arith.constant 0 : index
    %84 = vector.load %arg7[%c0_35, %c0_36] : memref<4x384xbf16, #tpu.memory_space<vmem>>, vector<4x288xbf16>
    %cst_37 = arith.constant dense<0.000000e+00> : vector<8x288xf32>
    %85 = tpu.matmul %83, %84, %cst_37 {dimension_numbers = #tpu.dot_dimension_numbers<[1], [0], [0], [1], [0, 0, 1, 1], [], []>} : vector<8x4xbf16>, vector<4x288xbf16>, vector<8x288xf32> -> vector<8x288xf32>
    %c0_38 = arith.constant 0 : index
    %c4 = arith.constant 4 : index
    %86 = vector.load %arg3[%c0_38, %c4] : memref<8x36xbf16, #tpu.memory_space<vmem>>, vector<8x4xbf16>
    %c0_39 = arith.constant 0 : index
    %c1_40 = arith.constant 1 : index
    %87 = vector.load %arg7[%c0_39, %c1_40] : memref<4x384xbf16, #tpu.memory_space<vmem>>, vector<4x288xbf16>
    %cst_41 = arith.constant dense<0.000000e+00> : vector<8x288xf32>
    %88 = tpu.matmul %86, %87, %cst_41 {dimension_numbers = #tpu.dot_dimension_numbers<[1], [0], [0], [1], [0, 0, 1, 1], [], []>} : vector<8x4xbf16>, vector<4x288xbf16>, vector<8x288xf32> -> vector<8x288xf32>
    %89 = arith.addf %85, %88 : vector<8x288xf32>
    %c0_42 = arith.constant 0 : index
    %c8 = arith.constant 8 : index
    %90 = vector.load %arg3[%c0_42, %c8] : memref<8x36xbf16, #tpu.memory_space<vmem>>, vector<8x4xbf16>
    %c0_43 = arith.constant 0 : index
    %c2 = arith.constant 2 : index
    %91 = vector.load %arg7[%c0_43, %c2] : memref<4x384xbf16, #tpu.memory_space<vmem>>, vector<4x288xbf16>
    %cst_44 = arith.constant dense<0.000000e+00> : vector<8x288xf32>
    %92 = tpu.matmul %90, %91, %cst_44 {dimension_numbers = #tpu.dot_dimension_numbers<[1], [0], [0], [1], [0, 0, 1, 1], [], []>} : vector<8x4xbf16>, vector<4x288xbf16>, vector<8x288xf32> -> vector<8x288xf32>
    %93 = arith.addf %89, %92 : vector<8x288xf32>
    %c0_45 = arith.constant 0 : index
    %c12 = arith.constant 12 : index
    %94 = vector.load %arg3[%c0_45, %c12] : memref<8x36xbf16, #tpu.memory_space<vmem>>, vector<8x4xbf16>
    %c0_46 = arith.constant 0 : index
    %c18 = arith.constant 18 : index
    %95 = vector.load %arg7[%c0_46, %c18] : memref<4x384xbf16, #tpu.memory_space<vmem>>, vector<4x288xbf16>
    %cst_47 = arith.constant dense<0.000000e+00> : vector<8x288xf32>
    %96 = tpu.matmul %94, %95, %cst_47 {dimension_numbers = #tpu.dot_dimension_numbers<[1], [0], [0], [1], [0, 0, 1, 1], [], []>} : vector<8x4xbf16>, vector<4x288xbf16>, vector<8x288xf32> -> vector<8x288xf32>
    %97 = arith.addf %93, %96 : vector<8x288xf32>
    %c0_48 = arith.constant 0 : index
    %c16 = arith.constant 16 : index
    %98 = vector.load %arg3[%c0_48, %c16] : memref<8x36xbf16, #tpu.memory_space<vmem>>, vector<8x4xbf16>
    %c0_49 = arith.constant 0 : index
    %c19_50 = arith.constant 19 : index
    %99 = vector.load %arg7[%c0_49, %c19_50] : memref<4x384xbf16, #tpu.memory_space<vmem>>, vector<4x288xbf16>
    %cst_51 = arith.constant dense<0.000000e+00> : vector<8x288xf32>
    %100 = tpu.matmul %98, %99, %cst_51 {dimension_numbers = #tpu.dot_dimension_numbers<[1], [0], [0], [1], [0, 0, 1, 1], [], []>} : vector<8x4xbf16>, vector<4x288xbf16>, vector<8x288xf32> -> vector<8x288xf32>
    %101 = arith.addf %97, %100 : vector<8x288xf32>
    %c0_52 = arith.constant 0 : index
    %c20 = arith.constant 20 : index
    %102 = vector.load %arg3[%c0_52, %c20] : memref<8x36xbf16, #tpu.memory_space<vmem>>, vector<8x4xbf16>
    %c0_53 = arith.constant 0 : index
    %c20_54 = arith.constant 20 : index
    %103 = vector.load %arg7[%c0_53, %c20_54] : memref<4x384xbf16, #tpu.memory_space<vmem>>, vector<4x288xbf16>
    %cst_55 = arith.constant dense<0.000000e+00> : vector<8x288xf32>
    %104 = tpu.matmul %102, %103, %cst_55 {dimension_numbers = #tpu.dot_dimension_numbers<[1], [0], [0], [1], [0, 0, 1, 1], [], []>} : vector<8x4xbf16>, vector<4x288xbf16>, vector<8x288xf32> -> vector<8x288xf32>
    %105 = arith.addf %101, %104 : vector<8x288xf32>
    %c0_56 = arith.constant 0 : index
    %c24 = arith.constant 24 : index
    %106 = vector.load %arg3[%c0_56, %c24] : memref<8x36xbf16, #tpu.memory_space<vmem>>, vector<8x4xbf16>
    %c0_57 = arith.constant 0 : index
    %c36 = arith.constant 36 : index
    %107 = vector.load %arg7[%c0_57, %c36] : memref<4x384xbf16, #tpu.memory_space<vmem>>, vector<4x288xbf16>
    %cst_58 = arith.constant dense<0.000000e+00> : vector<8x288xf32>
    %108 = tpu.matmul %106, %107, %cst_58 {dimension_numbers = #tpu.dot_dimension_numbers<[1], [0], [0], [1], [0, 0, 1, 1], [], []>} : vector<8x4xbf16>, vector<4x288xbf16>, vector<8x288xf32> -> vector<8x288xf32>
    %109 = arith.addf %105, %108 : vector<8x288xf32>
    %c0_59 = arith.constant 0 : index
    %c28 = arith.constant 28 : index
    %110 = vector.load %arg3[%c0_59, %c28] : memref<8x36xbf16, #tpu.memory_space<vmem>>, vector<8x4xbf16>
    %c0_60 = arith.constant 0 : index
    %c37_61 = arith.constant 37 : index
    %111 = vector.load %arg7[%c0_60, %c37_61] : memref<4x384xbf16, #tpu.memory_space<vmem>>, vector<4x288xbf16>
    %cst_62 = arith.constant dense<0.000000e+00> : vector<8x288xf32>
    %112 = tpu.matmul %110, %111, %cst_62 {dimension_numbers = #tpu.dot_dimension_numbers<[1], [0], [0], [1], [0, 0, 1, 1], [], []>} : vector<8x4xbf16>, vector<4x288xbf16>, vector<8x288xf32> -> vector<8x288xf32>
    %113 = arith.addf %109, %112 : vector<8x288xf32>
    %c0_63 = arith.constant 0 : index
    %c32 = arith.constant 32 : index
    %114 = vector.load %arg3[%c0_63, %c32] : memref<8x36xbf16, #tpu.memory_space<vmem>>, vector<8x4xbf16>
    %c0_64 = arith.constant 0 : index
    %c38 = arith.constant 38 : index
    %115 = vector.load %arg7[%c0_64, %c38] : memref<4x384xbf16, #tpu.memory_space<vmem>>, vector<4x288xbf16>
    %cst_65 = arith.constant dense<0.000000e+00> : vector<8x288xf32>
    %116 = tpu.matmul %114, %115, %cst_65 {dimension_numbers = #tpu.dot_dimension_numbers<[1], [0], [0], [1], [0, 0, 1, 1], [], []>} : vector<8x4xbf16>, vector<4x288xbf16>, vector<8x288xf32> -> vector<8x288xf32>
    %117 = arith.addf %113, %116 : vector<8x288xf32>
    %118 = vector.broadcast %19 : f32 to vector<8x288xf32>
    %119 = arith.mulf %117, %118 : vector<8x288xf32>
    %c0_66 = arith.constant 0 : index
    %c0_67 = arith.constant 0 : index
    %120 = vector.load %arg4[%c0_66, %c0_67] : memref<8x1xf32, #tpu.memory_space<vmem>>, vector<8x1xf32>
    %121 = vector.broadcast %120 : vector<8x1xf32> to vector<8x288xf32>
    %122 = arith.addf %119, %121 : vector<8x288xf32>
    %123 = vector.extract_strided_slice %122 {offsets = [0, 0], sizes = [8, 16], strides = [1, 1]} : vector<8x288xf32> to vector<8x16xf32>
    %c0_68 = arith.constant 0 : index
    %c0_69 = arith.constant 0 : index
    %c0_70 = arith.constant 0 : index
    %124 = vector.load %arg6[%c0_68, %c0_69, %c0_70] : memref<1x8x256xf32, #tpu.memory_space<vmem>>, vector<1x8x16xf32>
    %125 = vector.shape_cast %124 : vector<1x8x16xf32> to vector<8x16xf32>
    %126 = vector.shape_cast %123 : vector<8x16xf32> to vector<1x8x16xf32>
    tpu.vector_store %arg6[%c0_68, %c0_69, %c0_70], %126 {strides = array<i32>} : memref<1x8x256xf32, #tpu.memory_space<vmem>>, vector<1x8x16xf32>,
    %127 = vector.extract_strided_slice %122 {offsets = [0, 18], sizes = [8, 16], strides = [1, 1]} : vector<8x288xf32> to vector<8x16xf32>
    %c0_71 = arith.constant 0 : index
    %c0_72 = arith.constant 0 : index
    %c16_73 = arith.constant 16 : index
    %128 = vector.load %arg6[%c0_71, %c0_72, %c16_73] : memref<1x8x256xf32, #tpu.memory_space<vmem>>, vector<1x8x16xf32>
    %129 = vector.shape_cast %128 : vector<1x8x16xf32> to vector<8x16xf32>
    %130 = vector.shape_cast %127 : vector<8x16xf32> to vector<1x8x16xf32>
    tpu.vector_store %arg6[%c0_71, %c0_72, %c16_73], %130 {strides = array<i32>} : memref<1x8x256xf32, #tpu.memory_space<vmem>>, vector<1x8x16xf32>,
    %131 = vector.extract_strided_slice %122 {offsets = [0, 36], sizes = [8, 16], strides = [1, 1]} : vector<8x288xf32> to vector<8x16xf32>
    %c0_74 = arith.constant 0 : index
    %c0_75 = arith.constant 0 : index
    %c32_76 = arith.constant 32 : index
    %132 = vector.load %arg6[%c0_74, %c0_75, %c32_76] : memref<1x8x256xf32, #tpu.memory_space<vmem>>, vector<1x8x16xf32>
    %133 = vector.shape_cast %132 : vector<1x8x16xf32> to vector<8x16xf32>
    %134 = vector.shape_cast %131 : vector<8x16xf32> to vector<1x8x16xf32>
    tpu.vector_store %arg6[%c0_74, %c0_75, %c32_76], %134 {strides = array<i32>} : memref<1x8x256xf32, #tpu.memory_space<vmem>>, vector<1x8x16xf32>,
    %135 = vector.extract_strided_slice %122 {offsets = [0, 54], sizes = [8, 16], strides = [1, 1]} : vector<8x288xf32> to vector<8x16xf32>
    %c0_77 = arith.constant 0 : index
    %c0_78 = arith.constant 0 : index
    %c48 = arith.constant 48 : index
    %136 = vector.load %arg6[%c0_77, %c0_78, %c48] : memref<1x8x256xf32, #tpu.memory_space<vmem>>, vector<1x8x16xf32>
    %137 = vector.shape_cast %136 : vector<1x8x16xf32> to vector<8x16xf32>
    %138 = vector.shape_cast %135 : vector<8x16xf32> to vector<1x8x16xf32>
    tpu.vector_store %arg6[%c0_77, %c0_78, %c48], %138 {strides = array<i32>} : memref<1x8x256xf32, #tpu.memory_space<vmem>>, vector<1x8x16xf32>,
    %139 = vector.extract_strided_slice %122 {offsets = [0, 72], sizes = [8, 16], strides = [1, 1]} : vector<8x288xf32> to vector<8x16xf32>
    %c0_79 = arith.constant 0 : index
    %c0_80 = arith.constant 0 : index
    %c64 = arith.constant 64 : index
    %140 = vector.load %arg6[%c0_79, %c0_80, %c64] : memref<1x8x256xf32, #tpu.memory_space<vmem>>, vector<1x8x16xf32>
    %141 = vector.shape_cast %140 : vector<1x8x16xf32> to vector<8x16xf32>
    %142 = vector.shape_cast %139 : vector<8x16xf32> to vector<1x8x16xf32>
    tpu.vector_store %arg6[%c0_79, %c0_80, %c64], %142 {strides = array<i32>} : memref<1x8x256xf32, #tpu.memory_space<vmem>>, vector<1x8x16xf32>,
    %143 = vector.extract_strided_slice %122 {offsets = [0, 90], sizes = [8, 16], strides = [1, 1]} : vector<8x288xf32> to vector<8x16xf32>
    %c0_81 = arith.constant 0 : index
    %c0_82 = arith.constant 0 : index
    %c80 = arith.constant 80 : index
    %144 = vector.load %arg6[%c0_81, %c0_82, %c80] : memref<1x8x256xf32, #tpu.memory_space<vmem>>, vector<1x8x16xf32>
    %145 = vector.shape_cast %144 : vector<1x8x16xf32> to vector<8x16xf32>
    %146 = vector.shape_cast %143 : vector<8x16xf32> to vector<1x8x16xf32>
    tpu.vector_store %arg6[%c0_81, %c0_82, %c80], %146 {strides = array<i32>} : memref<1x8x256xf32, #tpu.memory_space<vmem>>, vector<1x8x16xf32>,
    %147 = vector.extract_strided_slice %122 {offsets = [0, 108], sizes = [8, 16], strides = [1, 1]} : vector<8x288xf32> to vector<8x16xf32>
    %c0_83 = arith.constant 0 : index
    %c0_84 = arith.constant 0 : index
    %c96 = arith.constant 96 : index
    %148 = vector.load %arg6[%c0_83, %c0_84, %c96] : memref<1x8x256xf32, #tpu.memory_space<vmem>>, vector<1x8x16xf32>
    %149 = vector.shape_cast %148 : vector<1x8x16xf32> to vector<8x16xf32>
    %150 = vector.shape_cast %147 : vector<8x16xf32> to vector<1x8x16xf32>
    tpu.vector_store %arg6[%c0_83, %c0_84, %c96], %150 {strides = array<i32>} : memref<1x8x256xf32, #tpu.memory_space<vmem>>, vector<1x8x16xf32>,
    %151 = vector.extract_strided_slice %122 {offsets = [0, 126], sizes = [8, 16], strides = [1, 1]} : vector<8x288xf32> to vector<8x16xf32>
    %c0_85 = arith.constant 0 : index
    %c0_86 = arith.constant 0 : index
    %c112 = arith.constant 112 : index
    %152 = vector.load %arg6[%c0_85, %c0_86, %c112] : memref<1x8x256xf32, #tpu.memory_space<vmem>>, vector<1x8x16xf32>
    %153 = vector.shape_cast %152 : vector<1x8x16xf32> to vector<8x16xf32>
    %154 = vector.shape_cast %151 : vector<8x16xf32> to vector<1x8x16xf32>
    tpu.vector_store %arg6[%c0_85, %c0_86, %c112], %154 {strides = array<i32>} : memref<1x8x256xf32, #tpu.memory_space<vmem>>, vector<1x8x16xf32>,
    %155 = vector.extract_strided_slice %122 {offsets = [0, 144], sizes = [8, 16], strides = [1, 1]} : vector<8x288xf32> to vector<8x16xf32>
    %c0_87 = arith.constant 0 : index
    %c0_88 = arith.constant 0 : index
    %c128 = arith.constant 128 : index
    %156 = vector.load %arg6[%c0_87, %c0_88, %c128] : memref<1x8x256xf32, #tpu.memory_space<vmem>>, vector<1x8x16xf32>
    %157 = vector.shape_cast %156 : vector<1x8x16xf32> to vector<8x16xf32>
    %158 = vector.shape_cast %155 : vector<8x16xf32> to vector<1x8x16xf32>
    tpu.vector_store %arg6[%c0_87, %c0_88, %c128], %158 {strides = array<i32>} : memref<1x8x256xf32, #tpu.memory_space<vmem>>, vector<1x8x16xf32>,
    %159 = vector.extract_strided_slice %122 {offsets = [0, 162], sizes = [8, 16], strides = [1, 1]} : vector<8x288xf32> to vector<8x16xf32>
    %c0_89 = arith.constant 0 : index
    %c0_90 = arith.constant 0 : index
    %c144 = arith.constant 144 : index
    %160 = vector.load %arg6[%c0_89, %c0_90, %c144] : memref<1x8x256xf32, #tpu.memory_space<vmem>>, vector<1x8x16xf32>
    %161 = vector.shape_cast %160 : vector<1x8x16xf32> to vector<8x16xf32>
    %162 = vector.shape_cast %159 : vector<8x16xf32> to vector<1x8x16xf32>
    tpu.vector_store %arg6[%c0_89, %c0_90, %c144], %162 {strides = array<i32>} : memref<1x8x256xf32, #tpu.memory_space<vmem>>, vector<1x8x16xf32>,
    %163 = vector.extract_strided_slice %122 {offsets = [0, 180], sizes = [8, 16], strides = [1, 1]} : vector<8x288xf32> to vector<8x16xf32>
    %c0_91 = arith.constant 0 : index
    %c0_92 = arith.constant 0 : index
    %c160 = arith.constant 160 : index
    %164 = vector.load %arg6[%c0_91, %c0_92, %c160] : memref<1x8x256xf32, #tpu.memory_space<vmem>>, vector<1x8x16xf32>
    %165 = vector.shape_cast %164 : vector<1x8x16xf32> to vector<8x16xf32>
    %166 = vector.shape_cast %163 : vector<8x16xf32> to vector<1x8x16xf32>
    tpu.vector_store %arg6[%c0_91, %c0_92, %c160], %166 {strides = array<i32>} : memref<1x8x256xf32, #tpu.memory_space<vmem>>, vector<1x8x16xf32>,
    %167 = vector.extract_strided_slice %122 {offsets = [0, 198], sizes = [8, 16], strides = [1, 1]} : vector<8x288xf32> to vector<8x16xf32>
    %c0_93 = arith.constant 0 : index
    %c0_94 = arith.constant 0 : index
    %c176 = arith.constant 176 : index
    %168 = vector.load %arg6[%c0_93, %c0_94, %c176] : memref<1x8x256xf32, #tpu.memory_space<vmem>>, vector<1x8x16xf32>
    %169 = vector.shape_cast %168 : vector<1x8x16xf32> to vector<8x16xf32>
    %170 = vector.shape_cast %167 : vector<8x16xf32> to vector<1x8x16xf32>
    tpu.vector_store %arg6[%c0_93, %c0_94, %c176], %170 {strides = array<i32>} : memref<1x8x256xf32, #tpu.memory_space<vmem>>, vector<1x8x16xf32>,
    %171 = vector.extract_strided_slice %122 {offsets = [0, 216], sizes = [8, 16], strides = [1, 1]} : vector<8x288xf32> to vector<8x16xf32>
    %c0_95 = arith.constant 0 : index
    %c0_96 = arith.constant 0 : index
    %c192 = arith.constant 192 : index
    %172 = vector.load %arg6[%c0_95, %c0_96, %c192] : memref<1x8x256xf32, #tpu.memory_space<vmem>>, vector<1x8x16xf32>
    %173 = vector.shape_cast %172 : vector<1x8x16xf32> to vector<8x16xf32>
    %174 = vector.shape_cast %171 : vector<8x16xf32> to vector<1x8x16xf32>
    tpu.vector_store %arg6[%c0_95, %c0_96, %c192], %174 {strides = array<i32>} : memref<1x8x256xf32, #tpu.memory_space<vmem>>, vector<1x8x16xf32>,
    %175 = vector.extract_strided_slice %122 {offsets = [0, 234], sizes = [8, 16], strides = [1, 1]} : vector<8x288xf32> to vector<8x16xf32>
    %c0_97 = arith.constant 0 : index
    %c0_98 = arith.constant 0 : index
    %c208 = arith.constant 208 : index
    %176 = vector.load %arg6[%c0_97, %c0_98, %c208] : memref<1x8x256xf32, #tpu.memory_space<vmem>>, vector<1x8x16xf32>
    %177 = vector.shape_cast %176 : vector<1x8x16xf32> to vector<8x16xf32>
    %178 = vector.shape_cast %175 : vector<8x16xf32> to vector<1x8x16xf32>
    tpu.vector_store %arg6[%c0_97, %c0_98, %c208], %178 {strides = array<i32>} : memref<1x8x256xf32, #tpu.memory_space<vmem>>, vector<1x8x16xf32>,
    %179 = vector.extract_strided_slice %122 {offsets = [0, 252], sizes = [8, 16], strides = [1, 1]} : vector<8x288xf32> to vector<8x16xf32>
    %c0_99 = arith.constant 0 : index
    %c0_100 = arith.constant 0 : index
    %c224 = arith.constant 224 : index
    %180 = vector.load %arg6[%c0_99, %c0_100, %c224] : memref<1x8x256xf32, #tpu.memory_space<vmem>>, vector<1x8x16xf32>
    %181 = vector.shape_cast %180 : vector<1x8x16xf32> to vector<8x16xf32>
    %182 = vector.shape_cast %179 : vector<8x16xf32> to vector<1x8x16xf32>
    tpu.vector_store %arg6[%c0_99, %c0_100, %c224], %182 {strides = array<i32>} : memref<1x8x256xf32, #tpu.memory_space<vmem>>, vector<1x8x16xf32>,
    %183 = vector.extract_strided_slice %122 {offsets = [0, 270], sizes = [8, 16], strides = [1, 1]} : vector<8x288xf32> to vector<8x16xf32>
    %c0_101 = arith.constant 0 : index
    %c0_102 = arith.constant 0 : index
    %c240 = arith.constant 240 : index
    %184 = vector.load %arg6[%c0_101, %c0_102, %c240] : memref<1x8x256xf32, #tpu.memory_space<vmem>>, vector<1x8x16xf32>
    %185 = vector.shape_cast %184 : vector<1x8x16xf32> to vector<8x16xf32>
    %186 = vector.shape_cast %183 : vector<8x16xf32> to vector<1x8x16xf32>
    tpu.vector_store %arg6[%c0_101, %c0_102, %c240], %186 {strides = array<i32>} : memref<1x8x256xf32, #tpu.memory_space<vmem>>, vector<1x8x16xf32>,
    return
  }
  func.func @transform_0(%arg0: i32) -> (i32, i32) {
    %c0_i32 = arith.constant 0 : i32
    %c0_i32_0 = arith.constant 0 : i32
    %c0_i32_1 = arith.constant 0 : i32
    return %c0_i32, %c0_i32_0 : i32, i32
  }
  func.func @transform_1(%arg0: i32) -> (i32, i32, i32) {
    %c0_i32 = arith.constant 0 : i32
    %c0_i32_0 = arith.constant 0 : i32
    %c0_i32_1 = arith.constant 0 : i32
    return %arg0, %c0_i32, %c0_i32_0 : i32, i32, i32
  }
  func.func @transform_2(%arg0: i32) -> (i32, i32) {
    %c0_i32 = arith.constant 0 : i32
    %c0_i32_0 = arith.constant 0 : i32
    %c0_i32_1 = arith.constant 0 : i32
    return %c0_i32, %c0_i32_0 : i32, i32
  }
  func.func @transform_3(%arg0: i32) -> (i32, i32) {
    %c0_i32 = arith.constant 0 : i32
    %c0_i32_0 = arith.constant 0 : i32
    %c0_i32_1 = arith.constant 0 : i32
    return %c0_i32, %c0_i32_0 : i32, i32
  }
  func.func @transform_4(%arg0: i32) -> i32 {
    %c0_i32 = arith.constant 0 : i32
    %c0_i32_0 = arith.constant 0 : i32
    return %c0_i32 : i32
  }
  func.func @transform_5(%arg0: i32) -> (i32, i32, i32) {
    %c0_i32 = arith.constant 0 : i32
    %c0_i32_0 = arith.constant 0 : i32
    %c0_i32_1 = arith.constant 0 : i32
    return %arg0, %c0_i32, %c0_i32_0 : i32, i32, i32
  }
}

</mosaic_0001>

<llo_original>
// kernel: quant_module_forward.2
$region0: #{quant_module_forward.2}
  #allocation0 [shape = 'u32[]', space=smem, size = 0x4, offset = 0x4, fixed_abs, tag = 'smem constant byte address 0x4 - core index']
  #allocation1 [shape = 'u32[144,128]{1,0:T(1,128)}', space=vmem, size = 0x12000, scoped, tag = 'internal scratch']
  %s0 = inlined_call_operand.vmem [shape: f32[16,128], index: 0, kind: input, shape index: {}]
  %s1 = inlined_call_operand.vmem [shape: f32[2,128], index: 1, kind: output, shape index: {}]
  %s2 = sld [smem:[#allocation0]]
  $region22: #{quant_module_forward.2} parent=0
    _
  %s4 = ssub.s32 1, %s2
  %s5 = scalar_select 0, %s4, %s2
  // Predicated region
  $region2: #{quant_module_forward.2} parent=0 // pred_check
    _
  $region3: #{quant_module_forward.2} parent=0 // pred_check_branch
    %7 = sbr.rel (0) target = $region5
  $region4: #{quant_module_forward.2} parent=0 // pred_region
    _
  $region5: #{quant_module_forward.2} parent=0 // pred_fallthru
    _
  %v8 = vld [vmem:[%s0] sm:$0xff]
  %v9 = vld [vmem:[%s0 + $0x8] sm:$0xff]
  %v10 = vmin.f32 %v8, %v9
  %v11 = vrot.slane %v10, 4
  %v12 = vmin.f32 %v10, %v11
  %v13 = vrot.slane %v12, 2
  %v14 = vmin.f32 %v12, %v13
  %v15 = vrot.slane %v14, 1
  %v16 = vmin.f32 %v14, %v15
  %v17 = vmax.f32 %v8, %v9
  %v18 = vrot.slane %v17, 4
  %v19 = vmax.f32 %v17, %v18
  %v20 = vrot.slane %v19, 2
  %v21 = vmax.f32 %v19, %v20
  %v22 = vrot.slane %v21, 1
  %v23 = vmax.f32 %v21, %v22
  %p24 = scmp.eq.s32.totalorder 0, 0
  // Predicated region
  $region6: #{quant_module_forward.2} parent=0 // pred_check
    %p25 = pneg %p24
  $region7: #{quant_module_forward.2} parent=0 // pred_check_branch
    %27 = sbr.rel (%p25) target = $region9
  $region8: #{quant_module_forward.2} parent=0 // pred_region
    %28 = vst [vmem:[%s1] sm:$0x1] %v16
    %29 = vst [vmem:[%s1 + $0x1] sm:$0x1] %v23
  $region9: #{quant_module_forward.2} parent=0 // pred_fallthru
    _
  %p30 = scmp.ne.s32.totalorder 0, 0
  // Predicated region
  $region10: #{quant_module_forward.2} parent=0 // pred_check
    %p31 = pneg %p30
  $region11: #{quant_module_forward.2} parent=0 // pred_check_branch
    %33 = sbr.rel (%p31) target = $region13
  $region12: #{quant_module_forward.2} parent=0 // pred_region
    %v34 = vld [vmem:[%s1] sm:$0x1]
    %v35 = vmin.f32 %v34, %v16
    %36 = vst [vmem:[%s1] sm:$0x1] %v35
    %v37 = vld [vmem:[%s1 + $0x1] sm:$0x1]
    %v38 = vmax.f32 %v37, %v23
    %39 = vst [vmem:[%s1 + $0x1] sm:$0x1] %v38
  $region13: #{quant_module_forward.2} parent=0 // pred_fallthru
    _
  // Predicated region
  $region14: #{quant_module_forward.2} parent=0 // pred_check
    _
  $region15: #{quant_module_forward.2} parent=0 // pred_check_branch
    %41 = sbr.rel (0) target = $region17
  $region16: #{quant_module_forward.2} parent=0 // pred_region
    _
  $region17: #{quant_module_forward.2} parent=0 // pred_fallthru
    _
  // Predicated region
  $region18: #{quant_module_forward.2} parent=0 // pred_check
    _
  $region19: #{quant_module_forward.2} parent=0 // pred_check_branch
    %43 = sbr.rel (0) target = $region21
  $region20: #{quant_module_forward.2} parent=0 // pred_region
    _
  $region21: #{quant_module_forward.2} parent=0 // pred_fallthru
    _

// kernel: quant_module_forward.3
$region0: #{quant_module_forward.3}
  #allocation0 [shape = 'u32[]', space=smem, size = 0x4, offset = 0x4, fixed_abs, tag = 'smem constant byte address 0x4 - core index']
  #allocation1 [shape = 'u32[144,128]{1,0:T(1,128)}', space=vmem, size = 0x12000, scoped, tag = 'internal scratch']
  #allocation2 [shape = 'bf16[4,384]{1,0:T(4,128)(2,1)}', space=vmem, size = 0xc00, scoped, tag = 'scratch operand']
  #allocation3 [shape = 'f32[1]{0:T(128)S(6)}', space=smem, size = 0x200, scoped, tag = 'scoped memory for quant_module_forward.3']
  %s0 = inlined_call_operand.vmem [shape: f32[2,128], index: 0, kind: input, shape index: {}]
  %s1 = inlined_call_operand.vmem [shape: f32[2,4,256], index: 1, kind: input, shape index: {}]
  %s2 = inlined_call_operand.vmem [shape: bf16[8,36], index: 2, kind: input, shape index: {}]
  %s3 = inlined_call_operand.vmem [shape: f32[8,1], index: 3, kind: input, shape index: {}]
  %s4 = inlined_call_operand.<no memory space> [shape: f32[1], index: 4, kind: input, shape index: {}]
  %s5 = inlined_call_operand.vmem [shape: f32[2,8,256], index: 5, kind: output, shape index: {}]
  %s6 = sld [smem:[#allocation0]]
  $region53: #{quant_module_forward.3} parent=0
    _
  %s8 = ssub.s32 1, %s6
  %s9 = scalar_select 0, %s8, %s6
  %10 = sst [smem:[#allocation3]] %s4
  loop: start=0, step=1, limit=4
  $region2: #{quant_module_forward.3} parent=0 // loop_pre_header
    _
  $region3: #{quant_module_forward.3} parent=0 // loop_header
    %s12 = sphi 0, %s16
    %p13 = scmp.ge.s32.totalorder %s12, 4
    %s20 = sphi 0, %s20
    %s22 = sphi 0, %s20
    %s23 = sphi 0, %s22
    %s37 = sphi 0, %s23
    %s43 = sphi 0, %s45
    %s46 = sphi 0, %s43
    %s47 = sphi 0, %s46
    %s63 = sphi 0, %s47
    %s67 = sphi 0, %s67
    %s69 = sphi 0, %s67
    %s70 = sphi 0, %s69
    %s84 = sphi 0, %s70
    %s88 = sphi 0, %s88
    %s90 = sphi 0, %s88
    %s91 = sphi 0, %s90
    %s105 = sphi 0, %s91
    %s109 = sphi 0, %s109
    %s111 = sphi 0, %s109
    %s112 = sphi 0, %s111
    %s126 = sphi 0, %s112
    %s132 = sphi 0, %s134
    %s135 = sphi 0, %s132
    %s136 = sphi 0, %s135
    %s152 = sphi 0, %s136
  $region4: #{quant_module_forward.3} parent=0 // loop_header_branch
    %15 = sbr.rel (%p13) target = $region8
  $region5: #{quant_module_forward.3} parent=0 // loop_body
    %s17 = ssub.s32 %s12, 1
    %s18 = ssub.s32 %s12, 2
    %s19 = sadd.s32 %s12, 1
    %s21 = sadd.s32 %s20, 1
    %p24 = scmp.eq.s32.totalorder %s12, 1
    %p25 = scmp.ne.s32.totalorder %s20, %s22
    %p26 = scmp.eq.s32.totalorder %s12, 0
    %p27 = por %p25, %p26
    %p28 = scmp.ne.s32.totalorder %s20, %s22
    %p29 = scmp.eq.s32.totalorder %s17, 1
    %p30 = por %p28, %p29
    %p31 = scmp.ne.s32.totalorder %s22, %s23
    %p32 = scmp.eq.s32.totalorder %s17, 0
    %p33 = por %p31, %p32
    %p34 = scmp.ne.s32.totalorder %s22, %s23
    %p35 = scmp.eq.s32.totalorder %s18, 1
    %p36 = por %p34, %p35
    %p38 = scmp.ne.s32.totalorder %s23, %s37
    %p39 = scmp.eq.s32.totalorder %s18, 0
    %p40 = por %p38, %p39
    %s41 = ssub.s32 %s12, %s19
    %p42 = scmp.eq.s32.totalorder %s41, 0
    %s44 = sadd.s32 %s43, 1
    %s45 = scalar_select %p42, %s43, %s44
    %p48 = pneg %p42
    %p49 = scmp.eq.s32.totalorder %s12, 1
    %p50 = por %p48, %p49
    %p51 = scmp.ne.s32.totalorder %s43, %s46
    %p52 = scmp.eq.s32.totalorder %s12, 0
    %p53 = por %p51, %p52
    %p54 = scmp.ne.s32.totalorder %s43, %s46
    %p55 = scmp.eq.s32.totalorder %s17, 1
    %p56 = por %p54, %p55
    %p57 = scmp.ne.s32.totalorder %s46, %s47
    %p58 = scmp.eq.s32.totalorder %s17, 0
    %p59 = por %p57, %p58
    %p60 = scmp.ne.s32.totalorder %s46, %s47
    %p61 = scmp.eq.s32.totalorder %s18, 1
    %p62 = por %p60, %p61
    %p64 = scmp.ne.s32.totalorder %s47, %s63
    %p65 = scmp.eq.s32.totalorder %s18, 0
    %p66 = por %p64, %p65
    %s68 = sadd.s32 %s67, 1
    %p71 = scmp.eq.s32.totalorder %s12, 1
    %p72 = scmp.ne.s32.totalorder %s67, %s69
    %p73 = scmp.eq.s32.totalorder %s12, 0
    %p74 = por %p72, %p73
    %p75 = scmp.ne.s32.totalorder %s67, %s69
    %p76 = scmp.eq.s32.totalorder %s17, 1
    %p77 = por %p75, %p76
    %p78 = scmp.ne.s32.totalorder %s69, %s70
    %p79 = scmp.eq.s32.totalorder %s17, 0
    %p80 = por %p78, %p79
    %p81 = scmp.ne.s32.totalorder %s69, %s70
    %p82 = scmp.eq.s32.totalorder %s18, 1
    %p83 = por %p81, %p82
    %p85 = scmp.ne.s32.totalorder %s70, %s84
    %p86 = scmp.eq.s32.totalorder %s18, 0
    %p87 = por %p85, %p86
    %s89 = sadd.s32 %s88, 1
    %p92 = scmp.eq.s32.totalorder %s12, 1
    %p93 = scmp.ne.s32.totalorder %s88, %s90
    %p94 = scmp.eq.s32.totalorder %s12, 0
    %p95 = por %p93, %p94
    %p96 = scmp.ne.s32.totalorder %s88, %s90
    %p97 = scmp.eq.s32.totalorder %s17, 1
    %p98 = por %p96, %p97
    %p99 = scmp.ne.s32.totalorder %s90, %s91
    %p100 = scmp.eq.s32.totalorder %s17, 0
    %p101 = por %p99, %p100
    %p102 = scmp.ne.s32.totalorder %s90, %s91
    %p103 = scmp.eq.s32.totalorder %s18, 1
    %p104 = por %p102, %p103
    %p106 = scmp.ne.s32.totalorder %s91, %s105
    %p107 = scmp.eq.s32.totalorder %s18, 0
    %p108 = por %p106, %p107
    %s110 = sadd.s32 %s109, 1
    %p113 = scmp.eq.s32.totalorder %s12, 1
    %p114 = scmp.ne.s32.totalorder %s109, %s111
    %p115 = scmp.eq.s32.totalorder %s12, 0
    %p116 = por %p114, %p115
    %p117 = scmp.ne.s32.totalorder %s109, %s111
    %p118 = scmp.eq.s32.totalorder %s17, 1
    %p119 = por %p117, %p118
    %p120 = scmp.ne.s32.totalorder %s111, %s112
    %p121 = scmp.eq.s32.totalorder %s17, 0
    %p122 = por %p120, %p121
    %p123 = scmp.ne.s32.totalorder %s111, %s112
    %p124 = scmp.eq.s32.totalorder %s18, 1
    %p125 = por %p123, %p124
    %p127 = scmp.ne.s32.totalorder %s112, %s126
    %p128 = scmp.eq.s32.totalorder %s18, 0
    %p129 = por %p127, %p128
    %s130 = ssub.s32 %s12, %s19
    %p131 = scmp.eq.s32.totalorder %s130, 0
    %s133 = sadd.s32 %s132, 1
    %s134 = scalar_select %p131, %s132, %s133
    %p137 = pneg %p131
    %p138 = scmp.eq.s32.totalorder %s12, 1
    %p139 = por %p137, %p138
    %p140 = scmp.ne.s32.totalorder %s132, %s135
    %p141 = scmp.eq.s32.totalorder %s12, 0
    %p142 = por %p140, %p141
    %p143 = scmp.ne.s32.totalorder %s132, %s135
    %p144 = scmp.eq.s32.totalorder %s17, 1
    %p145 = por %p143, %p144
    %p146 = scmp.ne.s32.totalorder %s135, %s136
    %p147 = scmp.eq.s32.totalorder %s17, 0
    %p148 = por %p146, %p147
    %p149 = scmp.ne.s32.totalorder %s135, %s136
    %p150 = scmp.eq.s32.totalorder %s18, 1
    %p151 = por %p149, %p150
    %p153 = scmp.ne.s32.totalorder %s136, %s152
    %p154 = scmp.eq.s32.totalorder %s18, 0
    %p155 = por %p153, %p154
    %p156 = scmp.le.s32.totalorder 1, %s12
    %p157 = scmp.lt.s32.totalorder %s12, 3
    %p158 = pnand %p156, %p157
    %p159 = pneg %p158
    // Predicated region
    $region9: #{quant_module_forward.3} parent=5 // pred_check
      _
    $region10: #{quant_module_forward.3} parent=5 // pred_check_branch
      %161 = sbr.rel (%p158) target = $region12
    $region11: #{quant_module_forward.3} parent=5 // pred_region
      %s162 = ssub.s32 %s12, 1
      // Predicated region
      $region13: #{quant_module_forward.3} parent=11 // pred_check
        %p163 = pneg %p33
      $region14: #{quant_module_forward.3} parent=11 // pred_check_branch
        %165 = sbr.rel (%p163) target = $region16
      $region15: #{quant_module_forward.3} parent=11 // pred_region
        _
      $region16: #{quant_module_forward.3} parent=11 // pred_fallthru
        _
      // Predicated region
      $region17: #{quant_module_forward.3} parent=11 // pred_check
        %p166 = pneg %p80
      $region18: #{quant_module_forward.3} parent=11 // pred_check_branch
        %168 = sbr.rel (%p166) target = $region20
      $region19: #{quant_module_forward.3} parent=11 // pred_region
        _
      $region20: #{quant_module_forward.3} parent=11 // pred_fallthru
        _
      // Predicated region
      $region21: #{quant_module_forward.3} parent=11 // pred_check
        %p169 = pneg %p101
      $region22: #{quant_module_forward.3} parent=11 // pred_check_branch
        %171 = sbr.rel (%p169) target = $region24
      $region23: #{quant_module_forward.3} parent=11 // pred_region
        _
      $region24: #{quant_module_forward.3} parent=11 // pred_fallthru
        _
      // Predicated region
      $region25: #{quant_module_forward.3} parent=11 // pred_check
        %p172 = pneg %p122
      $region26: #{quant_module_forward.3} parent=11 // pred_check_branch
        %174 = sbr.rel (%p172) target = $region28
      $region27: #{quant_module_forward.3} parent=11 // pred_region
        _
      $region28: #{quant_module_forward.3} parent=11 // pred_fallthru
        _
    $region12: #{quant_module_forward.3} parent=5 // pred_fallthru
      _
    %p175 = scmp.lt.s32.totalorder %s12, 2
    // Predicated region
    $region29: #{quant_module_forward.3} parent=5 // pred_check
      %p176 = pneg %p175
    $region30: #{quant_module_forward.3} parent=5 // pred_check_branch
      %178 = sbr.rel (%p176) target = $region32
    $region31: #{quant_module_forward.3} parent=5 // pred_region
      // Predicated region
      $region33: #{quant_module_forward.3} parent=31 // pred_check
        %p179 = pneg %p53
      $region34: #{quant_module_forward.3} parent=31 // pred_check_branch
        %181 = sbr.rel (%p179) target = $region36
      $region35: #{quant_module_forward.3} parent=31 // pred_region
        %p182 = scmp.lt.s32.totalorder %s12, 1
        %s183 = scalar_select %p182, %s12, 1
        %s184 = smul.addr %s183, 2
        %s185 = smul.addr %s184, 4
        %s186 = scalar_lea.vmem %s1, %s185
      $region36: #{quant_module_forward.3} parent=31 // pred_fallthru
        _
    $region32: #{quant_module_forward.3} parent=5 // pred_fallthru
      _
    %p187 = scmp.le.s32.totalorder 1, %s12
    %p188 = scmp.lt.s32.totalorder %s12, 3
    %p189 = pnand %p187, %p188
    %p190 = pneg %p189
    // Predicated region
    $region37: #{quant_module_forward.3} parent=5 // pred_check
      _
    $region38: #{quant_module_forward.3} parent=5 // pred_check_branch
      %192 = sbr.rel (%p189) target = $region40
    $region39: #{quant_module_forward.3} parent=5 // pred_region
      %s193 = ssub.s32 %s12, 1
      %p194 = pneg %p33
      %p195 = pneg %p30
      %p196 = scmp.lt.s32.totalorder %s17, 1
      %s197 = scalar_select %p196, %s17, 1
      %s198 = smul.addr %s197, 2
      %s199 = smul.addr %s198, 4
      %s200 = scalar_lea.vmem %s1, %s199
      %p201 = pneg %p59
      %p202 = pneg %p56
      %p203 = pneg %p80
      %p204 = pneg %p77
      %p205 = pneg %p101
      %p206 = pneg %p98
      %p207 = pneg %p122
      %p208 = pneg %p119
      %p209 = pneg %p148
      %p210 = pneg %p145
      %p211 = scmp.lt.s32.totalorder %s17, 1
      %s212 = scalar_select %p211, %s17, 1
      %s213 = smul.addr %s212, 2
      %s214 = smul.addr %s213, 8
      %s215 = scalar_lea.vmem %s5, %s214
      %p216 = scmp.lt.s32.totalorder %s17, 1
      %s217 = scalar_select %p216, %s17, 1
      %s218 = smul.addr %s217, 2
      %s219 = smul.addr %s218, 4
      %s220 = scalar_lea.vmem %s1, %s219
      %p221 = scmp.lt.s32.totalorder %s17, 1
      %s222 = scalar_select %p221, %s17, 1
      %s223 = smul.addr %s222, 2
      %s224 = smul.addr %s223, 8
      %s225 = scalar_lea.vmem %s5, %s224
      %v227 = vld [vmem:[%s0] sm:$0x1]
      %vm228 = vcmask 1040384
      %v229 = vsel %vm228, %v227, inf
      %230 = vmin.xlane.f32.xlu0 %v229
      %v231 = vpop.xlane.xlu0 %230
      %v232 = vrot.slane %v231, 4
      %v233 = vmin.f32 %v231, %v232
      %v234 = vrot.slane %v233, 2
      %v235 = vmin.f32 %v233, %v234
      %v236 = vrot.slane %v235, 1
      %v237 = vmin.f32 %v235, %v236
      %s238 = vtos %v237
      %v239 = vld [vmem:[%s0 + $0x1] sm:$0x1]
      %v240 = vsel %vm228, %v239, -inf
      %241 = vmax.xlane.f32.xlu0 %v240
      %v242 = vpop.xlane.xlu0 %241
      %v243 = vrot.slane %v242, 4
      %v244 = vmax.f32 %v242, %v243
      %v245 = vrot.slane %v244, 2
      %v246 = vmax.f32 %v244, %v245
      %v247 = vrot.slane %v246, 1
      %v248 = vmax.f32 %v246, %v247
      %s249 = vtos %v248
      %s250 = ssub.f32 %s249, %s238
      %v251 = vrcp.pop 255.0
      %s252 = vtos %v251
      %s253 = smul.f32 %s250, %s252
      %s254 = smax.f32 %s253, 1e-08
      %s255 = smin.f32 %s238, 0.0
      %s256 = ssub.f32 0.0, %s255
      %v257 = vstv %s254
      %v258 = vrcp.pop %v257
      %s259 = vtos %v258
      %s260 = smul.f32 %s256, %s259
      %s261 = scvt.f32.s32 %s260
      %s262 = scvt.s32.f32 %s261
      %s263 = sand.u32 2147483647, %s262
      %s264 = sand.u32 %s260, 2147483648
      %s265 = sor.u32 %s263, %s264
      %s266 = sand.u32 2147483647, %s260
      %p267 = scmp.lt.f32.partialorder %s266, 2.1474836e+09
      %s268 = scalar_select %p267, %s265, %s260
      %v269 = vstv %s254
      %v270 = vrcp.pop %v269
      %s271 = vtos %v270
      %s272 = sld [smem:[#allocation3]]
      %s273 = smul.f32 %s254, %s272
      %v274 = vld [vmem:[%s220] sm:$0xff]
      %v275 = vstv %s271
      %v276 = vmul.f32 %v274, %v275
      %v277 = vround.ne.pseudo %v276
      %v278 = vstv %s268
      %v279 = vadd.f32 %v277, %v278
      %v280 = vmax.f32 %v279, 0.0
      %v281 = vmin.f32 %v280, 255.0
      %v282 = vsub.f32 %v281, %v278
      %v284 = vcombine.high %v282, %v282
      %v286 = vpack.c.bf16 %v282, %v282
      %v287 = vpack.c.bf16 %v284, %v284
      %288 = vst [vmem:[#allocation2] sm:$0x3f] 0
      %v291 = vunpack.c.l.s4 1983009808
      %v292 = vunpack.c.0.s8 %v291
      %v293 = vlaneseq
      %v294 = vshrl.u32 %v293, 7
      %v295 = vsub.s32 %v292, %v294
      %v296 = vrot.slane %v286, %v295
      %297 = vrot.lane.b32.xlu0 %v296, 19
      %v298 = vpop.permute.xlu0 %297
      %vm300 = vcmask 279704
      %301 = vst.msk [vmem:[#allocation2] sm:$0x3] %vm300, %v298
      %302 = vrot.lane.b32.xlu0 %v296, 21
      %v303 = vpop.permute.xlu0 %302
      %vm305 = vcmask 427304
      %306 = vst.msk [vmem:[#allocation2] sm:$0x3] %vm305, %v303
      %307 = vrot.lane.b32.xlu0 %v296, 23
      %v308 = vpop.permute.xlu0 %307
      %vm310 = vcmask 574904
      %311 = vst.msk [vmem:[#allocation2] sm:$0x3] %vm310, %v308
      %312 = vrot.lane.b32.xlu0 %v296, 25
      %v313 = vpop.permute.xlu0 %312
      %vm315 = vcmask 722504
      %316 = vst.msk [vmem:[#allocation2] sm:$0x3] %vm315, %v313
      %317 = vrot.lane.b32.xlu0 %v296, 27
      %v318 = vpop.permute.xlu0 %317
      %vm320 = vcmask 870104
      %321 = vst.msk [vmem:[#allocation2] sm:$0x3] %vm320, %v318
      %322 = vrot.lane.b32.xlu0 %v296, 29
      %v323 = vpop.permute.xlu0 %322
      %vm325 = vcmask 1017704
      %326 = vst.msk [vmem:[#allocation2] sm:$0x3] %vm325, %v323
      %327 = vrot.lane.b32.xlu0 %v296, 31
      %v328 = vpop.permute.xlu0 %327
      %v329 = vrot.slane %v328, 6
      %vm330 = vcmask 252928
      %v331 = vsel %vm330, %v329, %v328
      %vm333 = vcmask 1042424
      %vm334 = vcmask 117762
      %vm335 = vmor %vm334, %vm333
      %336 = vst.msk [vmem:[#allocation2] sm:$0xf] %vm335, %v331
      %337 = vrot.lane.b32.xlu0 %v296, 33
      %v338 = vpop.permute.xlu0 %337
      %vm340 = vcmask 263304
      %341 = vst.msk [vmem:[#allocation2 + $0x2] sm:$0x3] %vm340, %v338
      %v344 = vunpack.c.l.s4 1983009808
      %v345 = vunpack.c.0.s8 %v344
      %v346 = vlaneseq
      %v347 = vshrl.u32 %v346, 7
      %v348 = vsub.s32 %v345, %v347
      %v349 = vrot.slane %v287, %v348
      %350 = vrot.lane.b32.xlu0 %v349, 35
      %v351 = vpop.permute.xlu0 %350
      %vm353 = vcmask 410904
      %354 = vst.msk [vmem:[#allocation2 + $0x2] sm:$0x3] %vm353, %v351
      %355 = vrot.lane.b32.xlu0 %v349, 37
      %v356 = vpop.permute.xlu0 %355
      %vm358 = vcmask 558504
      %359 = vst.msk [vmem:[#allocation2 + $0x2] sm:$0x3] %vm358, %v356
      %360 = vrot.lane.b32.xlu0 %v349, 39
      %v361 = vpop.permute.xlu0 %360
      %vm363 = vcmask 706104
      %364 = vst.msk [vmem:[#allocation2 + $0x2] sm:$0x3] %vm363, %v361
      %365 = vrot.lane.b32.xlu0 %v349, 41
      %v366 = vpop.permute.xlu0 %365
      %vm368 = vcmask 853704
      %369 = vst.msk [vmem:[#allocation2 + $0x2] sm:$0x3] %vm368, %v366
      %370 = vrot.lane.b32.xlu0 %v349, 43
      %v371 = vpop.permute.xlu0 %370
      %vm373 = vcmask 1001304
      %374 = vst.msk [vmem:[#allocation2 + $0x2] sm:$0x3] %vm373, %v371
      %375 = vrot.lane.b32.xlu0 %v349, 45
      %v376 = vpop.permute.xlu0 %375
      %v377 = vrot.slane %v376, 6
      %vm378 = vcmask 367616
      %v379 = vsel %vm378, %v377, %v376
      %vm381 = vcmask 1042408
      %vm382 = vcmask 101378
      %vm383 = vmor %vm382, %vm381
      %384 = vst.msk [vmem:[#allocation2 + $0x2] sm:$0xf] %vm383, %v379
      %385 = vrot.lane.b32.xlu0 %v349, 47
      %v386 = vpop.permute.xlu0 %385
      %vm388 = vcmask 246904
      %389 = vst.msk [vmem:[#allocation2 + $0x4] sm:$0x3] %vm388, %v386
      %390 = vrot.lane.b32.xlu0 %v349, 49
      %v391 = vpop.permute.xlu0 %390
      %vm393 = vcmask 394504
      %394 = vst.msk [vmem:[#allocation2 + $0x4] sm:$0x3] %vm393, %v391
      %v395 = vld [vmem:[%s2] sm:$0xf]
      %v396 = vld [vmem:[#allocation2] sm:$0x3f]
      %v398 = vunpack.c.l.b16 %v395
      %v399 = vpack.c.b16 %v398, %v398
      %400 = vrot.lane.b32.xlu0 %v399, 124
      %v401 = vpop.permute.xlu0 %400
      %v403 = vcombine.high %v396, %v396
      %v405 = vunpack.c.l.s4 1983009808
      %v406 = vunpack.c.0.s8 %v405
      %v407 = vlaneseq
      %v408 = vshrl.u32 %v407, 7
      %v409 = vsub.s32 %v406, %v408
      %v410 = vrot.slane %v396, %v409
      %v412 = vunpack.c.l.s4 1983009808
      %v413 = vunpack.c.0.s8 %v412
      %v414 = vlaneseq
      %v415 = vshrl.u32 %v414, 7
      %v416 = vsub.s32 %v413, %v415
      %v417 = vrot.slane %v403, %v416
      %v418 = vcombine.high %v410, %v410
      %419 = vrot.lane.b32.xlu0 %v410, 127
      %v420 = vpop.permute.xlu0 %419
      %421 = vrot.lane.b32.xlu0 %v418, 127
      %v422 = vpop.permute.xlu0 %421
      %423 = vrot.lane.b32.xlu0 %v417, 127
      %v424 = vpop.permute.xlu0 %423
      %vm425 = vcmask 1039360
      %v426 = vsel %vm425, %v420, %v422
      %v427 = vsel %vm425, %v422, %v424
      %vm428 = vcmask 31744
      %v430 = vsel %vm428, %v401, 0
      %vm432 = vcmask 1041408
      %v434 = vsel %vm432, %v426, 0
      %v437 = vsel %vm432, %v427, 0
      %v440 = vsel %vm432, %v424, 0
      %442 = vmatprep.subr.bf16.mxu0 %v437
      %443 = vmatpush1.bf16.msra.mxu0 %v434
      %444 = vmatprep.subr.bf16.mxu0 0
      %445 = vmatpush1.bf16.msra.mxu0 0
      %446 = vmatprep.subr.bf16.mxu0 0
      %447 = vmatpush1.bf16.msra.mxu0 0
      %448 = vmatprep.subr.bf16.mxu0 0
      %449 = vmatpush1.bf16.msra.mxu0 0
      %450 = vmatprep.subr.bf16.mxu0 0
      %451 = vmatpush1.bf16.msra.mxu0 0
      %452 = vmatprep.subr.bf16.mxu0 0
      %453 = vmatpush1.bf16.msra.mxu0 0
      %454 = vmatprep.subr.bf16.mxu0 0
      %455 = vmatpush1.bf16.msra.mxu0 0
      %456 = vmatprep.subr.bf16.mxu0 0
      %457 = vmatpush1.bf16.msra.mxu0 0
      %458 = vmatprep.subr.bf16.mxu0 0
      %459 = vmatpush1.bf16.msra.mxu0 0
      %460 = vmatprep.subr.bf16.mxu0 0
      %461 = vmatpush1.bf16.msra.mxu0 0
      %462 = vmatprep.subr.bf16.mxu0 0
      %463 = vmatpush1.bf16.msra.mxu0 0
      %464 = vmatprep.subr.bf16.mxu0 0
      %465 = vmatpush1.bf16.msra.mxu0 0
      %466 = vmatprep.subr.bf16.mxu0 0
      %467 = vmatpush1.bf16.msra.mxu0 0
      %468 = vmatprep.subr.bf16.mxu0 0
      %469 = vmatpush1.bf16.msra.mxu0 0
      %470 = vmatprep.subr.bf16.mxu0 0
      %471 = vmatpush1.bf16.msra.mxu0 0
      %472 = vmatprep.subr.bf16.mxu0 0
      %473 = vmatpush1.bf16.msra.mxu0 0
      %474 = vmatprep.mubr.bf16.mxu0 0
      %475 = vmatmul.mubr.bf16.gmra.mrb[0].mxu0 %v430
      %v476 = vpop.f32.mrb[0].mxu0
      %v477 = vadd.f32 0.0, %v476
      %v478 = vpop.f32.mrb[0].mxu0
      %v479 = vadd.f32 0.0, %v478
      %v480 = vpop.f32.mrb[0].mxu0
      %v481 = vpop.f32.mrb[0].mxu0
      %482 = vdwg.mxu0
      %483 = vmatprep.subr.bf16.mxu0 0
      %484 = vmatpush1.bf16.msra.mxu0 %v440
      %485 = vmatprep.subr.bf16.mxu0 0
      %486 = vmatpush1.bf16.msra.mxu0 0
      %487 = vmatprep.subr.bf16.mxu0 0
      %488 = vmatpush1.bf16.msra.mxu0 0
      %489 = vmatprep.subr.bf16.mxu0 0
      %490 = vmatpush1.bf16.msra.mxu0 0
      %491 = vmatprep.subr.bf16.mxu0 0
      %492 = vmatpush1.bf16.msra.mxu0 0
      %493 = vmatprep.subr.bf16.mxu0 0
      %494 = vmatpush1.bf16.msra.mxu0 0
      %495 = vmatprep.subr.bf16.mxu0 0
      %496 = vmatpush1.bf16.msra.mxu0 0
      %497 = vmatprep.subr.bf16.mxu0 0
      %498 = vmatpush1.bf16.msra.mxu0 0
      %499 = vmatprep.subr.bf16.mxu0 0
      %500 = vmatpush1.bf16.msra.mxu0 0
      %501 = vmatprep.subr.bf16.mxu0 0
      %502 = vmatpush1.bf16.msra.mxu0 0
      %503 = vmatprep.subr.bf16.mxu0 0
      %504 = vmatpush1.bf16.msra.mxu0 0
      %505 = vmatprep.subr.bf16.mxu0 0
      %506 = vmatpush1.bf16.msra.mxu0 0
      %507 = vmatprep.subr.bf16.mxu0 0
      %508 = vmatpush1.bf16.msra.mxu0 0
      %509 = vmatprep.subr.bf16.mxu0 0
      %510 = vmatpush1.bf16.msra.mxu0 0
      %511 = vmatprep.subr.bf16.mxu0 0
      %512 = vmatpush1.bf16.msra.mxu0 0
      %513 = vmatprep.subr.bf16.mxu0 0
      %514 = vmatpush1.bf16.msra.mxu0 0
      %515 = vmatprep.mubr.bf16.mxu0 0
      %516 = vmatmul.mubr.bf16.gmra.mrb[0].mxu0 %v430
      %v517 = vpop.f32.mrb[0].mxu0
      %v518 = vadd.f32 0.0, %v517
      %v519 = vpop.f32.mrb[0].mxu0
      %v520 = vpop.f32.mrb[0].mxu0
      %v521 = vpop.f32.mrb[0].mxu0
      %522 = vdwg.mxu0
      %v524 = vsel %vm428, %v395, 0
      %v527 = vsel %vm432, %v410, 0
      %v530 = vsel %vm432, %v418, 0
      %v533 = vsel %vm432, %v417, 0
      %535 = vmatprep.subr.bf16.mxu0 %v530
      %536 = vmatpush1.bf16.msra.mxu0 %v527
      %537 = vmatprep.subr.bf16.mxu0 0
      %538 = vmatpush1.bf16.msra.mxu0 0
      %539 = vmatprep.subr.bf16.mxu0 0
      %540 = vmatpush1.bf16.msra.mxu0 0
      %541 = vmatprep.subr.bf16.mxu0 0
      %542 = vmatpush1.bf16.msra.mxu0 0
      %543 = vmatprep.subr.bf16.mxu0 0
      %544 = vmatpush1.bf16.msra.mxu0 0
      %545 = vmatprep.subr.bf16.mxu0 0
      %546 = vmatpush1.bf16.msra.mxu0 0
      %547 = vmatprep.subr.bf16.mxu0 0
      %548 = vmatpush1.bf16.msra.mxu0 0
      %549 = vmatprep.subr.bf16.mxu0 0
      %550 = vmatpush1.bf16.msra.mxu0 0
      %551 = vmatprep.subr.bf16.mxu0 0
      %552 = vmatpush1.bf16.msra.mxu0 0
      %553 = vmatprep.subr.bf16.mxu0 0
      %554 = vmatpush1.bf16.msra.mxu0 0
      %555 = vmatprep.subr.bf16.mxu0 0
      %556 = vmatpush1.bf16.msra.mxu0 0
      %557 = vmatprep.subr.bf16.mxu0 0
      %558 = vmatpush1.bf16.msra.mxu0 0
      %559 = vmatprep.subr.bf16.mxu0 0
      %560 = vmatpush1.bf16.msra.mxu0 0
      %561 = vmatprep.subr.bf16.mxu0 0
      %562 = vmatpush1.bf16.msra.mxu0 0
      %563 = vmatprep.subr.bf16.mxu0 0
      %564 = vmatpush1.bf16.msra.mxu0 0
      %565 = vmatprep.subr.bf16.mxu0 0
      %566 = vmatpush1.bf16.msra.mxu0 0
      %567 = vmatprep.mubr.bf16.mxu0 0
      %568 = vmatmul.mubr.bf16.gmra.mrb[0].mxu0 %v524
      %v569 = vpop.f32.mrb[0].mxu0
      %v570 = vadd.f32 %v477, %v569
      %v571 = vpop.f32.mrb[0].mxu0
      %v572 = vadd.f32 %v479, %v571
      %v573 = vpop.f32.mrb[0].mxu0
      %v574 = vpop.f32.mrb[0].mxu0
      %575 = vdwg.mxu0
      %576 = vmatprep.subr.bf16.mxu0 0
      %577 = vmatpush1.bf16.msra.mxu0 %v533
      %578 = vmatprep.subr.bf16.mxu0 0
      %579 = vmatpush1.bf16.msra.mxu0 0
      %580 = vmatprep.subr.bf16.mxu0 0
      %581 = vmatpush1.bf16.msra.mxu0 0
      %582 = vmatprep.subr.bf16.mxu0 0
      %583 = vmatpush1.bf16.msra.mxu0 0
      %584 = vmatprep.subr.bf16.mxu0 0
      %585 = vmatpush1.bf16.msra.mxu0 0
      %586 = vmatprep.subr.bf16.mxu0 0
      %587 = vmatpush1.bf16.msra.mxu0 0
      %588 = vmatprep.subr.bf16.mxu0 0
      %589 = vmatpush1.bf16.msra.mxu0 0
      %590 = vmatprep.subr.bf16.mxu0 0
      %591 = vmatpush1.bf16.msra.mxu0 0
      %592 = vmatprep.subr.bf16.mxu0 0
      %593 = vmatpush1.bf16.msra.mxu0 0
      %594 = vmatprep.subr.bf16.mxu0 0
      %595 = vmatpush1.bf16.msra.mxu0 0
      %596 = vmatprep.subr.bf16.mxu0 0
      %597 = vmatpush1.bf16.msra.mxu0 0
      %598 = vmatprep.subr.bf16.mxu0 0
      %599 = vmatpush1.bf16.msra.mxu0 0
      %600 = vmatprep.subr.bf16.mxu0 0
      %601 = vmatpush1.bf16.msra.mxu0 0
      %602 = vmatprep.subr.bf16.mxu0 0
      %603 = vmatpush1.bf16.msra.mxu0 0
      %604 = vmatprep.subr.bf16.mxu0 0
      %605 = vmatpush1.bf16.msra.mxu0 0
      %606 = vmatprep.subr.bf16.mxu0 0
      %607 = vmatpush1.bf16.msra.mxu0 0
      %608 = vmatprep.mubr.bf16.mxu0 0
      %609 = vmatmul.mubr.bf16.gmra.mrb[0].mxu0 %v524
      %v610 = vpop.f32.mrb[0].mxu0
      %v611 = vadd.f32 %v518, %v610
      %v612 = vpop.f32.mrb[0].mxu0
      %v613 = vpop.f32.mrb[0].mxu0
      %v614 = vpop.f32.mrb[0].mxu0
      %615 = vdwg.mxu0
      %v616 = vld [vmem:[%s2] sm:$0xf]
      %v617 = vld [vmem:[#allocation2] sm:$0x3f]
      %v619 = vunpack.c.l.b16 %v616
      %v620 = vpack.c.b16 %v619, %v619
      %621 = vrot.lane.b32.xlu0 %v620, 120
      %v622 = vpop.permute.xlu0 %621
      %v624 = vcombine.high %v617, %v617
      %v626 = vunpack.c.l.s4 1983009808
      %v627 = vunpack.c.0.s8 %v626
      %v628 = vlaneseq
      %v629 = vshrl.u32 %v628, 7
      %v630 = vsub.s32 %v627, %v629
      %v631 = vrot.slane %v617, %v630
      %v633 = vunpack.c.l.s4 1983009808
      %v634 = vunpack.c.0.s8 %v633
      %v635 = vlaneseq
      %v636 = vshrl.u32 %v635, 7
      %v637 = vsub.s32 %v634, %v636
      %v638 = vrot.slane %v624, %v637
      %v639 = vcombine.high %v631, %v631
      %640 = vrot.lane.b32.xlu0 %v631, 126
      %v641 = vpop.permute.xlu0 %640
      %642 = vrot.lane.b32.xlu0 %v639, 126
      %v643 = vpop.permute.xlu0 %642
      %644 = vrot.lane.b32.xlu0 %v638, 126
      %v645 = vpop.permute.xlu0 %644
      %vm646 = vcmask 1031168
      %v647 = vsel %vm646, %v641, %v643
      %v648 = vsel %vm646, %v643, %v645
      %v650 = vsel %vm428, %v622, 0
      %v653 = vsel %vm432, %v647, 0
      %v656 = vsel %vm432, %v648, 0
      %v659 = vsel %vm432, %v645, 0
      %661 = vmatprep.subr.bf16.mxu0 %v656
      %662 = vmatpush1.bf16.msra.mxu0 %v653
      %663 = vmatprep.subr.bf16.mxu0 0
      %664 = vmatpush1.bf16.msra.mxu0 0
      %665 = vmatprep.subr.bf16.mxu0 0
      %666 = vmatpush1.bf16.msra.mxu0 0
      %667 = vmatprep.subr.bf16.mxu0 0
      %668 = vmatpush1.bf16.msra.mxu0 0
      %669 = vmatprep.subr.bf16.mxu0 0
      %670 = vmatpush1.bf16.msra.mxu0 0
      %671 = vmatprep.subr.bf16.mxu0 0
      %672 = vmatpush1.bf16.msra.mxu0 0
      %673 = vmatprep.subr.bf16.mxu0 0
      %674 = vmatpush1.bf16.msra.mxu0 0
      %675 = vmatprep.subr.bf16.mxu0 0
      %676 = vmatpush1.bf16.msra.mxu0 0
      %677 = vmatprep.subr.bf16.mxu0 0
      %678 = vmatpush1.bf16.msra.mxu0 0
      %679 = vmatprep.subr.bf16.mxu0 0
      %680 = vmatpush1.bf16.msra.mxu0 0
      %681 = vmatprep.subr.bf16.mxu0 0
      %682 = vmatpush1.bf16.msra.mxu0 0
      %683 = vmatprep.subr.bf16.mxu0 0
      %684 = vmatpush1.bf16.msra.mxu0 0
      %685 = vmatprep.subr.bf16.mxu0 0
      %686 = vmatpush1.bf16.msra.mxu0 0
      %687 = vmatprep.subr.bf16.mxu0 0
      %688 = vmatpush1.bf16.msra.mxu0 0
      %689 = vmatprep.subr.bf16.mxu0 0
      %690 = vmatpush1.bf16.msra.mxu0 0
      %691 = vmatprep.subr.bf16.mxu0 0
      %692 = vmatpush1.bf16.msra.mxu0 0
      %693 = vmatprep.mubr.bf16.mxu0 0
      %694 = vmatmul.mubr.bf16.gmra.mrb[0].mxu0 %v650
      %v695 = vpop.f32.mrb[0].mxu0
      %v696 = vadd.f32 0.0, %v695
      %v697 = vpop.f32.mrb[0].mxu0
      %v698 = vadd.f32 0.0, %v697
      %v699 = vpop.f32.mrb[0].mxu0
      %v700 = vpop.f32.mrb[0].mxu0
      %701 = vdwg.mxu0
      %702 = vmatprep.subr.bf16.mxu0 0
      %703 = vmatpush1.bf16.msra.mxu0 %v659
      %704 = vmatprep.subr.bf16.mxu0 0
      %705 = vmatpush1.bf16.msra.mxu0 0
      %706 = vmatprep.subr.bf16.mxu0 0
      %707 = vmatpush1.bf16.msra.mxu0 0
      %708 = vmatprep.subr.bf16.mxu0 0
      %709 = vmatpush1.bf16.msra.mxu0 0
      %710 = vmatprep.subr.bf16.mxu0 0
      %711 = vmatpush1.bf16.msra.mxu0 0
      %712 = vmatprep.subr.bf16.mxu0 0
      %713 = vmatpush1.bf16.msra.mxu0 0
      %714 = vmatprep.subr.bf16.mxu0 0
      %715 = vmatpush1.bf16.msra.mxu0 0
      %716 = vmatprep.subr.bf16.mxu0 0
      %717 = vmatpush1.bf16.msra.mxu0 0
      %718 = vmatprep.subr.bf16.mxu0 0
      %719 = vmatpush1.bf16.msra.mxu0 0
      %720 = vmatprep.subr.bf16.mxu0 0
      %721 = vmatpush1.bf16.msra.mxu0 0
      %722 = vmatprep.subr.bf16.mxu0 0
      %723 = vmatpush1.bf16.msra.mxu0 0
      %724 = vmatprep.subr.bf16.mxu0 0
      %725 = vmatpush1.bf16.msra.mxu0 0
      %726 = vmatprep.subr.bf16.mxu0 0
      %727 = vmatpush1.bf16.msra.mxu0 0
      %728 = vmatprep.subr.bf16.mxu0 0
      %729 = vmatpush1.bf16.msra.mxu0 0
      %730 = vmatprep.subr.bf16.mxu0 0
      %731 = vmatpush1.bf16.msra.mxu0 0
      %732 = vmatprep.subr.bf16.mxu0 0
      %733 = vmatpush1.bf16.msra.mxu0 0
      %734 = vmatprep.mubr.bf16.mxu0 0
      %735 = vmatmul.mubr.bf16.gmra.mrb[0].mxu0 %v650
      %v736 = vpop.f32.mrb[0].mxu0
      %v737 = vadd.f32 0.0, %v736
      %v738 = vpop.f32.mrb[0].mxu0
      %v739 = vpop.f32.mrb[0].mxu0
      %v740 = vpop.f32.mrb[0].mxu0
      %741 = vdwg.mxu0
      %v742 = vadd.f32 %v570, %v696
      %v743 = vadd.f32 %v572, %v698
      %v744 = vadd.f32 %v611, %v737
      %v745 = vld [vmem:[%s2] sm:$0xf]
      %v746 = vld [vmem:[#allocation2] sm:$0x3f]
      %v748 = vunpack.c.l.b16 %v745
      %v749 = vpack.c.b16 %v748, %v748
      %750 = vrot.lane.b32.xlu0 %v749, 116
      %v751 = vpop.permute.xlu0 %750
      %v753 = vcombine.high %v746, %v746
      %v755 = vunpack.c.l.s4 1983009808
      %v756 = vunpack.c.0.s8 %v755
      %v757 = vlaneseq
      %v758 = vshrl.u32 %v757, 7
      %v759 = vsub.s32 %v756, %v758
      %v760 = vrot.slane %v746, %v759
      %v762 = vunpack.c.l.s4 1983009808
      %v763 = vunpack.c.0.s8 %v762
      %v764 = vlaneseq
      %v765 = vshrl.u32 %v764, 7
      %v766 = vsub.s32 %v763, %v765
      %v767 = vrot.slane %v753, %v766
      %v768 = vcombine.high %v760, %v760
      %769 = vrot.lane.b32.xlu0 %v760, 110
      %v770 = vpop.permute.xlu0 %769
      %771 = vrot.lane.b32.xlu0 %v768, 110
      %v772 = vpop.permute.xlu0 %771
      %773 = vrot.lane.b32.xlu0 %v767, 110
      %v774 = vpop.permute.xlu0 %773
      %vm775 = vcmask 900096
      %v776 = vsel %vm775, %v770, %v772
      %v777 = vsel %vm775, %v772, %v774
      %v779 = vsel %vm428, %v751, 0
      %v782 = vsel %vm432, %v776, 0
      %v785 = vsel %vm432, %v777, 0
      %v788 = vsel %vm432, %v774, 0
      %790 = vmatprep.subr.bf16.mxu0 %v785
      %791 = vmatpush1.bf16.msra.mxu0 %v782
      %792 = vmatprep.subr.bf16.mxu0 0
      %793 = vmatpush1.bf16.msra.mxu0 0
      %794 = vmatprep.subr.bf16.mxu0 0
      %795 = vmatpush1.bf16.msra.mxu0 0
      %796 = vmatprep.subr.bf16.mxu0 0
      %797 = vmatpush1.bf16.msra.mxu0 0
      %798 = vmatprep.subr.bf16.mxu0 0
      %799 = vmatpush1.bf16.msra.mxu0 0
      %800 = vmatprep.subr.bf16.mxu0 0
      %801 = vmatpush1.bf16.msra.mxu0 0
      %802 = vmatprep.subr.bf16.mxu0 0
      %803 = vmatpush1.bf16.msra.mxu0 0
      %804 = vmatprep.subr.bf16.mxu0 0
      %805 = vmatpush1.bf16.msra.mxu0 0
      %806 = vmatprep.subr.bf16.mxu0 0
      %807 = vmatpush1.bf16.msra.mxu0 0
      %808 = vmatprep.subr.bf16.mxu0 0
      %809 = vmatpush1.bf16.msra.mxu0 0
      %810 = vmatprep.subr.bf16.mxu0 0
      %811 = vmatpush1.bf16.msra.mxu0 0
      %812 = vmatprep.subr.bf16.mxu0 0
      %813 = vmatpush1.bf16.msra.mxu0 0
      %814 = vmatprep.subr.bf16.mxu0 0
      %815 = vmatpush1.bf16.msra.mxu0 0
      %816 = vmatprep.subr.bf16.mxu0 0
      %817 = vmatpush1.bf16.msra.mxu0 0
      %818 = vmatprep.subr.bf16.mxu0 0
      %819 = vmatpush1.bf16.msra.mxu0 0
      %820 = vmatprep.subr.bf16.mxu0 0
      %821 = vmatpush1.bf16.msra.mxu0 0
      %822 = vmatprep.mubr.bf16.mxu0 0
      %823 = vmatmul.mubr.bf16.gmra.mrb[0].mxu0 %v779
      %v824 = vpop.f32.mrb[0].mxu0
      %v825 = vadd.f32 0.0, %v824
      %v826 = vpop.f32.mrb[0].mxu0
      %v827 = vadd.f32 0.0, %v826
      %v828 = vpop.f32.mrb[0].mxu0
      %v829 = vpop.f32.mrb[0].mxu0
      %830 = vdwg.mxu0
      %831 = vmatprep.subr.bf16.mxu0 0
      %832 = vmatpush1.bf16.msra.mxu0 %v788
      %833 = vmatprep.subr.bf16.mxu0 0
      %834 = vmatpush1.bf16.msra.mxu0 0
      %835 = vmatprep.subr.bf16.mxu0 0
      %836 = vmatpush1.bf16.msra.mxu0 0
      %837 = vmatprep.subr.bf16.mxu0 0
      %838 = vmatpush1.bf16.msra.mxu0 0
      %839 = vmatprep.subr.bf16.mxu0 0
      %840 = vmatpush1.bf16.msra.mxu0 0
      %841 = vmatprep.subr.bf16.mxu0 0
      %842 = vmatpush1.bf16.msra.mxu0 0
      %843 = vmatprep.subr.bf16.mxu0 0
      %844 = vmatpush1.bf16.msra.mxu0 0
      %845 = vmatprep.subr.bf16.mxu0 0
      %846 = vmatpush1.bf16.msra.mxu0 0
      %847 = vmatprep.subr.bf16.mxu0 0
      %848 = vmatpush1.bf16.msra.mxu0 0
      %849 = vmatprep.subr.bf16.mxu0 0
      %850 = vmatpush1.bf16.msra.mxu0 0
      %851 = vmatprep.subr.bf16.mxu0 0
      %852 = vmatpush1.bf16.msra.mxu0 0
      %853 = vmatprep.subr.bf16.mxu0 0
      %854 = vmatpush1.bf16.msra.mxu0 0
      %855 = vmatprep.subr.bf16.mxu0 0
      %856 = vmatpush1.bf16.msra.mxu0 0
      %857 = vmatprep.subr.bf16.mxu0 0
      %858 = vmatpush1.bf16.msra.mxu0 0
      %859 = vmatprep.subr.bf16.mxu0 0
      %860 = vmatpush1.bf16.msra.mxu0 0
      %861 = vmatprep.subr.bf16.mxu0 0
      %862 = vmatpush1.bf16.msra.mxu0 0
      %863 = vmatprep.mubr.bf16.mxu0 0
      %864 = vmatmul.mubr.bf16.gmra.mrb[0].mxu0 %v779
      %v865 = vpop.f32.mrb[0].mxu0
      %v866 = vadd.f32 0.0, %v865
      %v867 = vpop.f32.mrb[0].mxu0
      %v868 = vpop.f32.mrb[0].mxu0
      %v869 = vpop.f32.mrb[0].mxu0
      %870 = vdwg.mxu0
      %v871 = vadd.f32 %v742, %v825
      %v872 = vadd.f32 %v743, %v827
      %v873 = vadd.f32 %v744, %v866
      %v874 = vld [vmem:[%s2] sm:$0xf]
      %v875 = vld [vmem:[#allocation2] sm:$0x3f]
      %v877 = vunpack.c.l.b16 %v874
      %v878 = vpack.c.b16 %v877, %v877
      %879 = vrot.lane.b32.xlu0 %v878, 112
      %v880 = vpop.permute.xlu0 %879
      %v882 = vcombine.high %v875, %v875
      %v884 = vunpack.c.l.s4 1983009808
      %v885 = vunpack.c.0.s8 %v884
      %v886 = vlaneseq
      %v887 = vshrl.u32 %v886, 7
      %v888 = vsub.s32 %v885, %v887
      %v889 = vrot.slane %v875, %v888
      %v891 = vunpack.c.l.s4 1983009808
      %v892 = vunpack.c.0.s8 %v891
      %v893 = vlaneseq
      %v894 = vshrl.u32 %v893, 7
      %v895 = vsub.s32 %v892, %v894
      %v896 = vrot.slane %v882, %v895
      %v897 = vcombine.high %v889, %v889
      %898 = vrot.lane.b32.xlu0 %v889, 109
      %v899 = vpop.permute.xlu0 %898
      %900 = vrot.lane.b32.xlu0 %v897, 109
      %v901 = vpop.permute.xlu0 %900
      %902 = vrot.lane.b32.xlu0 %v896, 109
      %v903 = vpop.permute.xlu0 %902
      %vm904 = vcmask 891904
      %v905 = vsel %vm904, %v899, %v901
      %v906 = vsel %vm904, %v901, %v903
      %v908 = vsel %vm428, %v880, 0
      %v911 = vsel %vm432, %v905, 0
      %v914 = vsel %vm432, %v906, 0
      %v917 = vsel %vm432, %v903, 0
      %919 = vmatprep.subr.bf16.mxu0 %v914
      %920 = vmatpush1.bf16.msra.mxu0 %v911
      %921 = vmatprep.subr.bf16.mxu0 0
      %922 = vmatpush1.bf16.msra.mxu0 0
      %923 = vmatprep.subr.bf16.mxu0 0
      %924 = vmatpush1.bf16.msra.mxu0 0
      %925 = vmatprep.subr.bf16.mxu0 0
      %926 = vmatpush1.bf16.msra.mxu0 0
      %927 = vmatprep.subr.bf16.mxu0 0
      %928 = vmatpush1.bf16.msra.mxu0 0
      %929 = vmatprep.subr.bf16.mxu0 0
      %930 = vmatpush1.bf16.msra.mxu0 0
      %931 = vmatprep.subr.bf16.mxu0 0
      %932 = vmatpush1.bf16.msra.mxu0 0
      %933 = vmatprep.subr.bf16.mxu0 0
      %934 = vmatpush1.bf16.msra.mxu0 0
      %935 = vmatprep.subr.bf16.mxu0 0
      %936 = vmatpush1.bf16.msra.mxu0 0
      %937 = vmatprep.subr.bf16.mxu0 0
      %938 = vmatpush1.bf16.msra.mxu0 0
      %939 = vmatprep.subr.bf16.mxu0 0
      %940 = vmatpush1.bf16.msra.mxu0 0
      %941 = vmatprep.subr.bf16.mxu0 0
      %942 = vmatpush1.bf16.msra.mxu0 0
      %943 = vmatprep.subr.bf16.mxu0 0
      %944 = vmatpush1.bf16.msra.mxu0 0
      %945 = vmatprep.subr.bf16.mxu0 0
      %946 = vmatpush1.bf16.msra.mxu0 0
      %947 = vmatprep.subr.bf16.mxu0 0
      %948 = vmatpush1.bf16.msra.mxu0 0
      %949 = vmatprep.subr.bf16.mxu0 0
      %950 = vmatpush1.bf16.msra.mxu0 0
      %951 = vmatprep.mubr.bf16.mxu0 0
      %952 = vmatmul.mubr.bf16.gmra.mrb[0].mxu0 %v908
      %v953 = vpop.f32.mrb[0].mxu0
      %v954 = vadd.f32 0.0, %v953
      %v955 = vpop.f32.mrb[0].mxu0
      %v956 = vadd.f32 0.0, %v955
      %v957 = vpop.f32.mrb[0].mxu0
      %v958 = vpop.f32.mrb[0].mxu0
      %959 = vdwg.mxu0
      %960 = vmatprep.subr.bf16.mxu0 0
      %961 = vmatpush1.bf16.msra.mxu0 %v917
      %962 = vmatprep.subr.bf16.mxu0 0
      %963 = vmatpush1.bf16.msra.mxu0 0
      %964 = vmatprep.subr.bf16.mxu0 0
      %965 = vmatpush1.bf16.msra.mxu0 0
      %966 = vmatprep.subr.bf16.mxu0 0
      %967 = vmatpush1.bf16.msra.mxu0 0
      %968 = vmatprep.subr.bf16.mxu0 0
      %969 = vmatpush1.bf16.msra.mxu0 0
      %970 = vmatprep.subr.bf16.mxu0 0
      %971 = vmatpush1.bf16.msra.mxu0 0
      %972 = vmatprep.subr.bf16.mxu0 0
      %973 = vmatpush1.bf16.msra.mxu0 0
      %974 = vmatprep.subr.bf16.mxu0 0
      %975 = vmatpush1.bf16.msra.mxu0 0
      %976 = vmatprep.subr.bf16.mxu0 0
      %977 = vmatpush1.bf16.msra.mxu0 0
      %978 = vmatprep.subr.bf16.mxu0 0
      %979 = vmatpush1.bf16.msra.mxu0 0
      %980 = vmatprep.subr.bf16.mxu0 0
      %981 = vmatpush1.bf16.msra.mxu0 0
      %982 = vmatprep.subr.bf16.mxu0 0
      %983 = vmatpush1.bf16.msra.mxu0 0
      %984 = vmatprep.subr.bf16.mxu0 0
      %985 = vmatpush1.bf16.msra.mxu0 0
      %986 = vmatprep.subr.bf16.mxu0 0
      %987 = vmatpush1.bf16.msra.mxu0 0
      %988 = vmatprep.subr.bf16.mxu0 0
      %989 = vmatpush1.bf16.msra.mxu0 0
      %990 = vmatprep.subr.bf16.mxu0 0
      %991 = vmatpush1.bf16.msra.mxu0 0
      %992 = vmatprep.mubr.bf16.mxu0 0
      %993 = vmatmul.mubr.bf16.gmra.mrb[0].mxu0 %v908
      %v994 = vpop.f32.mrb[0].mxu0
      %v995 = vadd.f32 0.0, %v994
      %v996 = vpop.f32.mrb[0].mxu0
      %v997 = vpop.f32.mrb[0].mxu0
      %v998 = vpop.f32.mrb[0].mxu0
      %999 = vdwg.mxu0
      %v1000 = vadd.f32 %v871, %v954
      %v1001 = vadd.f32 %v872, %v956
      %v1002 = vadd.f32 %v873, %v995
      %v1003 = vld [vmem:[%s2] sm:$0xf]
      %v1004 = vld [vmem:[#allocation2] sm:$0x3f]
      %v1006 = vunpack.c.l.b16 %v1003
      %v1007 = vpack.c.b16 %v1006, %v1006
      %1008 = vrot.lane.b32.xlu0 %v1007, 108
      %v1009 = vpop.permute.xlu0 %1008
      %v1011 = vcombine.high %v1004, %v1004
      %v1013 = vunpack.c.l.s4 1983009808
      %v1014 = vunpack.c.0.s8 %v1013
      %v1015 = vlaneseq
      %v1016 = vshrl.u32 %v1015, 7
      %v1017 = vsub.s32 %v1014, %v1016
      %v1018 = vrot.slane %v1004, %v1017
      %v1020 = vunpack.c.l.s4 1983009808
      %v1021 = vunpack.c.0.s8 %v1020
      %v1022 = vlaneseq
      %v1023 = vshrl.u32 %v1022, 7
      %v1024 = vsub.s32 %v1021, %v1023
      %v1025 = vrot.slane %v1011, %v1024
      %v1026 = vcombine.high %v1018, %v1018
      %1027 = vrot.lane.b32.xlu0 %v1018, 108
      %v1028 = vpop.permute.xlu0 %1027
      %1029 = vrot.lane.b32.xlu0 %v1026, 108
      %v1030 = vpop.permute.xlu0 %1029
      %1031 = vrot.lane.b32.xlu0 %v1025, 108
      %v1032 = vpop.permute.xlu0 %1031
      %vm1033 = vcmask 883712
      %v1034 = vsel %vm1033, %v1028, %v1030
      %v1035 = vsel %vm1033, %v1030, %v1032
      %v1037 = vsel %vm428, %v1009, 0
      %v1040 = vsel %vm432, %v1034, 0
      %v1043 = vsel %vm432, %v1035, 0
      %v1046 = vsel %vm432, %v1032, 0
      %1048 = vmatprep.subr.bf16.mxu0 %v1043
      %1049 = vmatpush1.bf16.msra.mxu0 %v1040
      %1050 = vmatprep.subr.bf16.mxu0 0
      %1051 = vmatpush1.bf16.msra.mxu0 0
      %1052 = vmatprep.subr.bf16.mxu0 0
      %1053 = vmatpush1.bf16.msra.mxu0 0
      %1054 = vmatprep.subr.bf16.mxu0 0
      %1055 = vmatpush1.bf16.msra.mxu0 0
      %1056 = vmatprep.subr.bf16.mxu0 0
      %1057 = vmatpush1.bf16.msra.mxu0 0
      %1058 = vmatprep.subr.bf16.mxu0 0
      %1059 = vmatpush1.bf16.msra.mxu0 0
      %1060 = vmatprep.subr.bf16.mxu0 0
      %1061 = vmatpush1.bf16.msra.mxu0 0
      %1062 = vmatprep.subr.bf16.mxu0 0
      %1063 = vmatpush1.bf16.msra.mxu0 0
      %1064 = vmatprep.subr.bf16.mxu0 0
      %1065 = vmatpush1.bf16.msra.mxu0 0
      %1066 = vmatprep.subr.bf16.mxu0 0
      %1067 = vmatpush1.bf16.msra.mxu0 0
      %1068 = vmatprep.subr.bf16.mxu0 0
      %1069 = vmatpush1.bf16.msra.mxu0 0
      %1070 = vmatprep.subr.bf16.mxu0 0
      %1071 = vmatpush1.bf16.msra.mxu0 0
      %1072 = vmatprep.subr.bf16.mxu0 0
      %1073 = vmatpush1.bf16.msra.mxu0 0
      %1074 = vmatprep.subr.bf16.mxu0 0
      %1075 = vmatpush1.bf16.msra.mxu0 0
      %1076 = vmatprep.subr.bf16.mxu0 0
      %1077 = vmatpush1.bf16.msra.mxu0 0
      %1078 = vmatprep.subr.bf16.mxu0 0
      %1079 = vmatpush1.bf16.msra.mxu0 0
      %1080 = vmatprep.mubr.bf16.mxu0 0
      %1081 = vmatmul.mubr.bf16.gmra.mrb[0].mxu0 %v1037
      %v1082 = vpop.f32.mrb[0].mxu0
      %v1083 = vadd.f32 0.0, %v1082
      %v1084 = vpop.f32.mrb[0].mxu0
      %v1085 = vadd.f32 0.0, %v1084
      %v1086 = vpop.f32.mrb[0].mxu0
      %v1087 = vpop.f32.mrb[0].mxu0
      %1088 = vdwg.mxu0
      %1089 = vmatprep.subr.bf16.mxu0 0
      %1090 = vmatpush1.bf16.msra.mxu0 %v1046
      %1091 = vmatprep.subr.bf16.mxu0 0
      %1092 = vmatpush1.bf16.msra.mxu0 0
      %1093 = vmatprep.subr.bf16.mxu0 0
      %1094 = vmatpush1.bf16.msra.mxu0 0
      %1095 = vmatprep.subr.bf16.mxu0 0
      %1096 = vmatpush1.bf16.msra.mxu0 0
      %1097 = vmatprep.subr.bf16.mxu0 0
      %1098 = vmatpush1.bf16.msra.mxu0 0
      %1099 = vmatprep.subr.bf16.mxu0 0
      %1100 = vmatpush1.bf16.msra.mxu0 0
      %1101 = vmatprep.subr.bf16.mxu0 0
      %1102 = vmatpush1.bf16.msra.mxu0 0
      %1103 = vmatprep.subr.bf16.mxu0 0
      %1104 = vmatpush1.bf16.msra.mxu0 0
      %1105 = vmatprep.subr.bf16.mxu0 0
      %1106 = vmatpush1.bf16.msra.mxu0 0
      %1107 = vmatprep.subr.bf16.mxu0 0
      %1108 = vmatpush1.bf16.msra.mxu0 0
      %1109 = vmatprep.subr.bf16.mxu0 0
      %1110 = vmatpush1.bf16.msra.mxu0 0
      %1111 = vmatprep.subr.bf16.mxu0 0
      %1112 = vmatpush1.bf16.msra.mxu0 0
      %1113 = vmatprep.subr.bf16.mxu0 0
      %1114 = vmatpush1.bf16.msra.mxu0 0
      %1115 = vmatprep.subr.bf16.mxu0 0
      %1116 = vmatpush1.bf16.msra.mxu0 0
      %1117 = vmatprep.subr.bf16.mxu0 0
      %1118 = vmatpush1.bf16.msra.mxu0 0
      %1119 = vmatprep.subr.bf16.mxu0 0
      %1120 = vmatpush1.bf16.msra.mxu0 0
      %1121 = vmatprep.mubr.bf16.mxu0 0
      %1122 = vmatmul.mubr.bf16.gmra.mrb[0].mxu0 %v1037
      %v1123 = vpop.f32.mrb[0].mxu0
      %v1124 = vadd.f32 0.0, %v1123
      %v1125 = vpop.f32.mrb[0].mxu0
      %v1126 = vpop.f32.mrb[0].mxu0
      %v1127 = vpop.f32.mrb[0].mxu0
      %1128 = vdwg.mxu0
      %v1129 = vadd.f32 %v1000, %v1083
      %v1130 = vadd.f32 %v1001, %v1085
      %v1131 = vadd.f32 %v1002, %v1124
      %v1132 = vld [vmem:[%s2] sm:$0xf]
      %v1133 = vld [vmem:[#allocation2] sm:$0x3f]
      %v1135 = vunpack.c.l.b16 %v1132
      %v1136 = vpack.c.b16 %v1135, %v1135
      %1137 = vrot.lane.b32.xlu0 %v1136, 104
      %v1138 = vpop.permute.xlu0 %1137
      %v1140 = vcombine.high %v1133, %v1133
      %v1142 = vunpack.c.l.s4 1983009808
      %v1143 = vunpack.c.0.s8 %v1142
      %v1144 = vlaneseq
      %v1145 = vshrl.u32 %v1144, 7
      %v1146 = vsub.s32 %v1143, %v1145
      %v1147 = vrot.slane %v1133, %v1146
      %v1149 = vunpack.c.l.s4 1983009808
      %v1150 = vunpack.c.0.s8 %v1149
      %v1151 = vlaneseq
      %v1152 = vshrl.u32 %v1151, 7
      %v1153 = vsub.s32 %v1150, %v1152
      %v1154 = vrot.slane %v1140, %v1153
      %v1155 = vcombine.high %v1147, %v1147
      %1156 = vrot.lane.b32.xlu0 %v1147, 92
      %v1157 = vpop.permute.xlu0 %1156
      %1158 = vrot.lane.b32.xlu0 %v1155, 92
      %v1159 = vpop.permute.xlu0 %1158
      %1160 = vrot.lane.b32.xlu0 %v1154, 92
      %v1161 = vpop.permute.xlu0 %1160
      %vm1162 = vcmask 752640
      %v1163 = vsel %vm1162, %v1157, %v1159
      %v1164 = vsel %vm1162, %v1159, %v1161
      %v1166 = vsel %vm428, %v1138, 0
      %v1169 = vsel %vm432, %v1163, 0
      %v1172 = vsel %vm432, %v1164, 0
      %v1175 = vsel %vm432, %v1161, 0
      %1177 = vmatprep.subr.bf16.mxu0 %v1172
      %1178 = vmatpush1.bf16.msra.mxu0 %v1169
      %1179 = vmatprep.subr.bf16.mxu0 0
      %1180 = vmatpush1.bf16.msra.mxu0 0
      %1181 = vmatprep.subr.bf16.mxu0 0
      %1182 = vmatpush1.bf16.msra.mxu0 0
      %1183 = vmatprep.subr.bf16.mxu0 0
      %1184 = vmatpush1.bf16.msra.mxu0 0
      %1185 = vmatprep.subr.bf16.mxu0 0
      %1186 = vmatpush1.bf16.msra.mxu0 0
      %1187 = vmatprep.subr.bf16.mxu0 0
      %1188 = vmatpush1.bf16.msra.mxu0 0
      %1189 = vmatprep.subr.bf16.mxu0 0
      %1190 = vmatpush1.bf16.msra.mxu0 0
      %1191 = vmatprep.subr.bf16.mxu0 0
      %1192 = vmatpush1.bf16.msra.mxu0 0
      %1193 = vmatprep.subr.bf16.mxu0 0
      %1194 = vmatpush1.bf16.msra.mxu0 0
      %1195 = vmatprep.subr.bf16.mxu0 0
      %1196 = vmatpush1.bf16.msra.mxu0 0
      %1197 = vmatprep.subr.bf16.mxu0 0
      %1198 = vmatpush1.bf16.msra.mxu0 0
      %1199 = vmatprep.subr.bf16.mxu0 0
      %1200 = vmatpush1.bf16.msra.mxu0 0
      %1201 = vmatprep.subr.bf16.mxu0 0
      %1202 = vmatpush1.bf16.msra.mxu0 0
      %1203 = vmatprep.subr.bf16.mxu0 0
      %1204 = vmatpush1.bf16.msra.mxu0 0
      %1205 = vmatprep.subr.bf16.mxu0 0
      %1206 = vmatpush1.bf16.msra.mxu0 0
      %1207 = vmatprep.subr.bf16.mxu0 0
      %1208 = vmatpush1.bf16.msra.mxu0 0
      %1209 = vmatprep.mubr.bf16.mxu0 0
      %1210 = vmatmul.mubr.bf16.gmra.mrb[0].mxu0 %v1166
      %v1211 = vpop.f32.mrb[0].mxu0
      %v1212 = vadd.f32 0.0, %v1211
      %v1213 = vpop.f32.mrb[0].mxu0
      %v1214 = vadd.f32 0.0, %v1213
      %v1215 = vpop.f32.mrb[0].mxu0
      %v1216 = vpop.f32.mrb[0].mxu0
      %1217 = vdwg.mxu0
      %1218 = vmatprep.subr.bf16.mxu0 0
      %1219 = vmatpush1.bf16.msra.mxu0 %v1175
      %1220 = vmatprep.subr.bf16.mxu0 0
      %1221 = vmatpush1.bf16.msra.mxu0 0
      %1222 = vmatprep.subr.bf16.mxu0 0
      %1223 = vmatpush1.bf16.msra.mxu0 0
      %1224 = vmatprep.subr.bf16.mxu0 0
      %1225 = vmatpush1.bf16.msra.mxu0 0
      %1226 = vmatprep.subr.bf16.mxu0 0
      %1227 = vmatpush1.bf16.msra.mxu0 0
      %1228 = vmatprep.subr.bf16.mxu0 0
      %1229 = vmatpush1.bf16.msra.mxu0 0
      %1230 = vmatprep.subr.bf16.mxu0 0
      %1231 = vmatpush1.bf16.msra.mxu0 0
      %1232 = vmatprep.subr.bf16.mxu0 0
      %1233 = vmatpush1.bf16.msra.mxu0 0
      %1234 = vmatprep.subr.bf16.mxu0 0
      %1235 = vmatpush1.bf16.msra.mxu0 0
      %1236 = vmatprep.subr.bf16.mxu0 0
      %1237 = vmatpush1.bf16.msra.mxu0 0
      %1238 = vmatprep.subr.bf16.mxu0 0
      %1239 = vmatpush1.bf16.msra.mxu0 0
      %1240 = vmatprep.subr.bf16.mxu0 0
      %1241 = vmatpush1.bf16.msra.mxu0 0
      %1242 = vmatprep.subr.bf16.mxu0 0
      %1243 = vmatpush1.bf16.msra.mxu0 0
      %1244 = vmatprep.subr.bf16.mxu0 0
      %1245 = vmatpush1.bf16.msra.mxu0 0
      %1246 = vmatprep.subr.bf16.mxu0 0
      %1247 = vmatpush1.bf16.msra.mxu0 0
      %1248 = vmatprep.subr.bf16.mxu0 0
      %1249 = vmatpush1.bf16.msra.mxu0 0
      %1250 = vmatprep.mubr.bf16.mxu0 0
      %1251 = vmatmul.mubr.bf16.gmra.mrb[0].mxu0 %v1166
      %v1252 = vpop.f32.mrb[0].mxu0
      %v1253 = vadd.f32 0.0, %v1252
      %v1254 = vpop.f32.mrb[0].mxu0
      %v1255 = vpop.f32.mrb[0].mxu0
      %v1256 = vpop.f32.mrb[0].mxu0
      %1257 = vdwg.mxu0
      %v1258 = vadd.f32 %v1129, %v1212
      %v1259 = vadd.f32 %v1130, %v1214
      %v1260 = vadd.f32 %v1131, %v1253
      %v1261 = vld [vmem:[%s2] sm:$0xf]
      %v1262 = vld [vmem:[#allocation2] sm:$0x3f]
      %v1264 = vunpack.c.l.b16 %v1261
      %v1265 = vpack.c.b16 %v1264, %v1264
      %1266 = vrot.lane.b32.xlu0 %v1265, 100
      %v1267 = vpop.permute.xlu0 %1266
      %v1269 = vcombine.high %v1262, %v1262
      %v1271 = vunpack.c.l.s4 1983009808
      %v1272 = vunpack.c.0.s8 %v1271
      %v1273 = vlaneseq
      %v1274 = vshrl.u32 %v1273, 7
      %v1275 = vsub.s32 %v1272, %v1274
      %v1276 = vrot.slane %v1262, %v1275
      %v1278 = vunpack.c.l.s4 1983009808
      %v1279 = vunpack.c.0.s8 %v1278
      %v1280 = vlaneseq
      %v1281 = vshrl.u32 %v1280, 7
      %v1282 = vsub.s32 %v1279, %v1281
      %v1283 = vrot.slane %v1269, %v1282
      %v1284 = vcombine.high %v1276, %v1276
      %1285 = vrot.lane.b32.xlu0 %v1276, 91
      %v1286 = vpop.permute.xlu0 %1285
      %1287 = vrot.lane.b32.xlu0 %v1284, 91
      %v1288 = vpop.permute.xlu0 %1287
      %1289 = vrot.lane.b32.xlu0 %v1283, 91
      %v1290 = vpop.permute.xlu0 %1289
      %vm1291 = vcmask 744448
      %v1292 = vsel %vm1291, %v1286, %v1288
      %v1293 = vsel %vm1291, %v1288, %v1290
      %v1295 = vsel %vm428, %v1267, 0
      %v1298 = vsel %vm432, %v1292, 0
      %v1301 = vsel %vm432, %v1293, 0
      %v1304 = vsel %vm432, %v1290, 0
      %1306 = vmatprep.subr.bf16.mxu0 %v1301
      %1307 = vmatpush1.bf16.msra.mxu0 %v1298
      %1308 = vmatprep.subr.bf16.mxu0 0
      %1309 = vmatpush1.bf16.msra.mxu0 0
      %1310 = vmatprep.subr.bf16.mxu0 0
      %1311 = vmatpush1.bf16.msra.mxu0 0
      %1312 = vmatprep.subr.bf16.mxu0 0
      %1313 = vmatpush1.bf16.msra.mxu0 0
      %1314 = vmatprep.subr.bf16.mxu0 0
      %1315 = vmatpush1.bf16.msra.mxu0 0
      %1316 = vmatprep.subr.bf16.mxu0 0
      %1317 = vmatpush1.bf16.msra.mxu0 0
      %1318 = vmatprep.subr.bf16.mxu0 0
      %1319 = vmatpush1.bf16.msra.mxu0 0
      %1320 = vmatprep.subr.bf16.mxu0 0
      %1321 = vmatpush1.bf16.msra.mxu0 0
      %1322 = vmatprep.subr.bf16.mxu0 0
      %1323 = vmatpush1.bf16.msra.mxu0 0
      %1324 = vmatprep.subr.bf16.mxu0 0
      %1325 = vmatpush1.bf16.msra.mxu0 0
      %1326 = vmatprep.subr.bf16.mxu0 0
      %1327 = vmatpush1.bf16.msra.mxu0 0
      %1328 = vmatprep.subr.bf16.mxu0 0
      %1329 = vmatpush1.bf16.msra.mxu0 0
      %1330 = vmatprep.subr.bf16.mxu0 0
      %1331 = vmatpush1.bf16.msra.mxu0 0
      %1332 = vmatprep.subr.bf16.mxu0 0
      %1333 = vmatpush1.bf16.msra.mxu0 0
      %1334 = vmatprep.subr.bf16.mxu0 0
      %1335 = vmatpush1.bf16.msra.mxu0 0
      %1336 = vmatprep.subr.bf16.mxu0 0
      %1337 = vmatpush1.bf16.msra.mxu0 0
      %1338 = vmatprep.mubr.bf16.mxu0 0
      %1339 = vmatmul.mubr.bf16.gmra.mrb[0].mxu0 %v1295
      %v1340 = vpop.f32.mrb[0].mxu0
      %v1341 = vadd.f32 0.0, %v1340
      %v1342 = vpop.f32.mrb[0].mxu0
      %v1343 = vadd.f32 0.0, %v1342
      %v1344 = vpop.f32.mrb[0].mxu0
      %v1345 = vpop.f32.mrb[0].mxu0
      %1346 = vdwg.mxu0
      %1347 = vmatprep.subr.bf16.mxu0 0
      %1348 = vmatpush1.bf16.msra.mxu0 %v1304
      %1349 = vmatprep.subr.bf16.mxu0 0
      %1350 = vmatpush1.bf16.msra.mxu0 0
      %1351 = vmatprep.subr.bf16.mxu0 0
      %1352 = vmatpush1.bf16.msra.mxu0 0
      %1353 = vmatprep.subr.bf16.mxu0 0
      %1354 = vmatpush1.bf16.msra.mxu0 0
      %1355 = vmatprep.subr.bf16.mxu0 0
      %1356 = vmatpush1.bf16.msra.mxu0 0
      %1357 = vmatprep.subr.bf16.mxu0 0
      %1358 = vmatpush1.bf16.msra.mxu0 0
      %1359 = vmatprep.subr.bf16.mxu0 0
      %1360 = vmatpush1.bf16.msra.mxu0 0
      %1361 = vmatprep.subr.bf16.mxu0 0
      %1362 = vmatpush1.bf16.msra.mxu0 0
      %1363 = vmatprep.subr.bf16.mxu0 0
      %1364 = vmatpush1.bf16.msra.mxu0 0
      %1365 = vmatprep.subr.bf16.mxu0 0
      %1366 = vmatpush1.bf16.msra.mxu0 0
      %1367 = vmatprep.subr.bf16.mxu0 0
      %1368 = vmatpush1.bf16.msra.mxu0 0
      %1369 = vmatprep.subr.bf16.mxu0 0
      %1370 = vmatpush1.bf16.msra.mxu0 0
      %1371 = vmatprep.subr.bf16.mxu0 0
      %1372 = vmatpush1.bf16.msra.mxu0 0
      %1373 = vmatprep.subr.bf16.mxu0 0
      %1374 = vmatpush1.bf16.msra.mxu0 0
      %1375 = vmatprep.subr.bf16.mxu0 0
      %1376 = vmatpush1.bf16.msra.mxu0 0
      %1377 = vmatprep.subr.bf16.mxu0 0
      %1378 = vmatpush1.bf16.msra.mxu0 0
      %1379 = vmatprep.mubr.bf16.mxu0 0
      %1380 = vmatmul.mubr.bf16.gmra.mrb[0].mxu0 %v1295
      %v1381 = vpop.f32.mrb[0].mxu0
      %v1382 = vadd.f32 0.0, %v1381
      %v1383 = vpop.f32.mrb[0].mxu0
      %v1384 = vpop.f32.mrb[0].mxu0
      %v1385 = vpop.f32.mrb[0].mxu0
      %1386 = vdwg.mxu0
      %v1387 = vadd.f32 %v1258, %v1341
      %v1388 = vadd.f32 %v1259, %v1343
      %v1389 = vadd.f32 %v1260, %v1382
      %v1390 = vld [vmem:[%s2] sm:$0xf]
      %v1391 = vld [vmem:[#allocation2] sm:$0x3f]
      %v1393 = vunpack.c.l.b16 %v1390
      %v1394 = vpack.c.b16 %v1393, %v1393
      %1395 = vrot.lane.b32.xlu0 %v1394, 96
      %v1396 = vpop.permute.xlu0 %1395
      %v1398 = vcombine.high %v1391, %v1391
      %v1400 = vunpack.c.l.s4 1983009808
      %v1401 = vunpack.c.0.s8 %v1400
      %v1402 = vlaneseq
      %v1403 = vshrl.u32 %v1402, 7
      %v1404 = vsub.s32 %v1401, %v1403
      %v1405 = vrot.slane %v1391, %v1404
      %v1407 = vunpack.c.l.s4 1983009808
      %v1408 = vunpack.c.0.s8 %v1407
      %v1409 = vlaneseq
      %v1410 = vshrl.u32 %v1409, 7
      %v1411 = vsub.s32 %v1408, %v1410
      %v1412 = vrot.slane %v1398, %v1411
      %v1413 = vcombine.high %v1405, %v1405
      %1414 = vrot.lane.b32.xlu0 %v1405, 90
      %v1415 = vpop.permute.xlu0 %1414
      %1416 = vrot.lane.b32.xlu0 %v1413, 90
      %v1417 = vpop.permute.xlu0 %1416
      %1418 = vrot.lane.b32.xlu0 %v1412, 90
      %v1419 = vpop.permute.xlu0 %1418
      %vm1420 = vcmask 736256
      %v1421 = vsel %vm1420, %v1415, %v1417
      %v1422 = vsel %vm1420, %v1417, %v1419
      %v1424 = vsel %vm428, %v1396, 0
      %v1427 = vsel %vm432, %v1421, 0
      %v1430 = vsel %vm432, %v1422, 0
      %v1433 = vsel %vm432, %v1419, 0
      %1435 = vmatprep.subr.bf16.mxu0 %v1430
      %1436 = vmatpush1.bf16.msra.mxu0 %v1427
      %1437 = vmatprep.subr.bf16.mxu0 0
      %1438 = vmatpush1.bf16.msra.mxu0 0
      %1439 = vmatprep.subr.bf16.mxu0 0
      %1440 = vmatpush1.bf16.msra.mxu0 0
      %1441 = vmatprep.subr.bf16.mxu0 0
      %1442 = vmatpush1.bf16.msra.mxu0 0
      %1443 = vmatprep.subr.bf16.mxu0 0
      %1444 = vmatpush1.bf16.msra.mxu0 0
      %1445 = vmatprep.subr.bf16.mxu0 0
      %1446 = vmatpush1.bf16.msra.mxu0 0
      %1447 = vmatprep.subr.bf16.mxu0 0
      %1448 = vmatpush1.bf16.msra.mxu0 0
      %1449 = vmatprep.subr.bf16.mxu0 0
      %1450 = vmatpush1.bf16.msra.mxu0 0
      %1451 = vmatprep.subr.bf16.mxu0 0
      %1452 = vmatpush1.bf16.msra.mxu0 0
      %1453 = vmatprep.subr.bf16.mxu0 0
      %1454 = vmatpush1.bf16.msra.mxu0 0
      %1455 = vmatprep.subr.bf16.mxu0 0
      %1456 = vmatpush1.bf16.msra.mxu0 0
      %1457 = vmatprep.subr.bf16.mxu0 0
      %1458 = vmatpush1.bf16.msra.mxu0 0
      %1459 = vmatprep.subr.bf16.mxu0 0
      %1460 = vmatpush1.bf16.msra.mxu0 0
      %1461 = vmatprep.subr.bf16.mxu0 0
      %1462 = vmatpush1.bf16.msra.mxu0 0
      %1463 = vmatprep.subr.bf16.mxu0 0
      %1464 = vmatpush1.bf16.msra.mxu0 0
      %1465 = vmatprep.subr.bf16.mxu0 0
      %1466 = vmatpush1.bf16.msra.mxu0 0
      %1467 = vmatprep.mubr.bf16.mxu0 0
      %1468 = vmatmul.mubr.bf16.gmra.mrb[0].mxu0 %v1424
      %v1469 = vpop.f32.mrb[0].mxu0
      %v1470 = vadd.f32 0.0, %v1469
      %v1471 = vpop.f32.mrb[0].mxu0
      %v1472 = vadd.f32 0.0, %v1471
      %v1473 = vpop.f32.mrb[0].mxu0
      %v1474 = vpop.f32.mrb[0].mxu0
      %1475 = vdwg.mxu0
      %1476 = vmatprep.subr.bf16.mxu0 0
      %1477 = vmatpush1.bf16.msra.mxu0 %v1433
      %1478 = vmatprep.subr.bf16.mxu0 0
      %1479 = vmatpush1.bf16.msra.mxu0 0
      %1480 = vmatprep.subr.bf16.mxu0 0
      %1481 = vmatpush1.bf16.msra.mxu0 0
      %1482 = vmatprep.subr.bf16.mxu0 0
      %1483 = vmatpush1.bf16.msra.mxu0 0
      %1484 = vmatprep.subr.bf16.mxu0 0
      %1485 = vmatpush1.bf16.msra.mxu0 0
      %1486 = vmatprep.subr.bf16.mxu0 0
      %1487 = vmatpush1.bf16.msra.mxu0 0
      %1488 = vmatprep.subr.bf16.mxu0 0
      %1489 = vmatpush1.bf16.msra.mxu0 0
      %1490 = vmatprep.subr.bf16.mxu0 0
      %1491 = vmatpush1.bf16.msra.mxu0 0
      %1492 = vmatprep.subr.bf16.mxu0 0
      %1493 = vmatpush1.bf16.msra.mxu0 0
      %1494 = vmatprep.subr.bf16.mxu0 0
      %1495 = vmatpush1.bf16.msra.mxu0 0
      %1496 = vmatprep.subr.bf16.mxu0 0
      %1497 = vmatpush1.bf16.msra.mxu0 0
      %1498 = vmatprep.subr.bf16.mxu0 0
      %1499 = vmatpush1.bf16.msra.mxu0 0
      %1500 = vmatprep.subr.bf16.mxu0 0
      %1501 = vmatpush1.bf16.msra.mxu0 0
      %1502 = vmatprep.subr.bf16.mxu0 0
      %1503 = vmatpush1.bf16.msra.mxu0 0
      %1504 = vmatprep.subr.bf16.mxu0 0
      %1505 = vmatpush1.bf16.msra.mxu0 0
      %1506 = vmatprep.subr.bf16.mxu0 0
      %1507 = vmatpush1.bf16.msra.mxu0 0
      %1508 = vmatprep.mubr.bf16.mxu0 0
      %1509 = vmatmul.mubr.bf16.gmra.mrb[0].mxu0 %v1424
      %v1510 = vpop.f32.mrb[0].mxu0
      %v1511 = vadd.f32 0.0, %v1510
      %v1512 = vpop.f32.mrb[0].mxu0
      %v1513 = vpop.f32.mrb[0].mxu0
      %v1514 = vpop.f32.mrb[0].mxu0
      %1515 = vdwg.mxu0
      %v1516 = vadd.f32 %v1387, %v1470
      %v1517 = vadd.f32 %v1388, %v1472
      %v1518 = vadd.f32 %v1389, %v1511
      %v1519 = vstv %s273
      %v1520 = vmul.f32 %v1516, %v1519
      %v1521 = vmul.f32 %v1517, %v1519
      %v1522 = vmul.f32 %v1518, %v1519
      %v1523 = vld [vmem:[%s3] sm:$0xff]
      %1525 = vset.pattern.permute.xlu0 0
      %1526 = vperm.xlu0 %1525, %v1523
      %v1527 = vpop.permute.xlu0 %1526
      %v1529 = vadd.f32 %v1520, %v1527
      %v1530 = vadd.f32 %v1521, %v1527
      %v1531 = vadd.f32 %v1522, %v1527
      %vm1532 = vcmask 130048
      %1533 = vst.msk [vmem:[%s225] sm:$0xff] %vm1532, %v1529
      %1535 = vrot.lane.b32.xlu0 %v1529, 126
      %v1536 = vpop.permute.xlu0 %1535
      %vm1538 = vcmask 261248
      %1539 = vst.msk [vmem:[%s225] sm:$0xff] %vm1538, %v1536
      %1540 = vrot.lane.b32.xlu0 %v1529, 124
      %v1541 = vpop.permute.xlu0 %1540
      %vm1543 = vcmask 392448
      %1544 = vst.msk [vmem:[%s225] sm:$0xff] %vm1543, %v1541
      %1545 = vrot.lane.b32.xlu0 %v1529, 122
      %v1546 = vpop.permute.xlu0 %1545
      %vm1548 = vcmask 523648
      %1549 = vst.msk [vmem:[%s225] sm:$0xff] %vm1548, %v1546
      %1550 = vrot.lane.b32.xlu0 %v1529, 120
      %v1551 = vpop.permute.xlu0 %1550
      %vm1553 = vcmask 654848
      %1554 = vst.msk [vmem:[%s225] sm:$0xff] %vm1553, %v1551
      %1555 = vrot.lane.b32.xlu0 %v1529, 118
      %v1556 = vpop.permute.xlu0 %1555
      %vm1558 = vcmask 786048
      %1559 = vst.msk [vmem:[%s225] sm:$0xff] %vm1558, %v1556
      %1560 = vrot.lane.b32.xlu0 %v1529, 116
      %v1561 = vpop.permute.xlu0 %1560
      %vm1563 = vcmask 917248
      %1564 = vst.msk [vmem:[%s225] sm:$0xff] %vm1563, %v1561
      %1566 = vrot.lane.b32.xlu0 %v1529, 114
      %v1567 = vpop.permute.xlu0 %1566
      %1568 = vrot.lane.b32.xlu0 %v1530, 114
      %v1569 = vpop.permute.xlu0 %1568
      %vm1570 = vcmask 932864
      %v1571 = vsel %vm1570, %v1567, %v1569
      %vm1573 = vcmask 1048448
      %1574 = vst.msk [vmem:[%s225] sm:$0xff] %vm1573, %v1571
      %1575 = vrot.lane.b32.xlu0 %v1530, 112
      %v1576 = vpop.permute.xlu0 %1575
      %1578 = vst.msk [vmem:[%s225 + $0x8] sm:$0xff] %vm1532, %v1576
      %1579 = vrot.lane.b32.xlu0 %v1530, 110
      %v1580 = vpop.permute.xlu0 %1579
      %1582 = vst.msk [vmem:[%s225 + $0x8] sm:$0xff] %vm1538, %v1580
      %1583 = vrot.lane.b32.xlu0 %v1530, 108
      %v1584 = vpop.permute.xlu0 %1583
      %1586 = vst.msk [vmem:[%s225 + $0x8] sm:$0xff] %vm1543, %v1584
      %1587 = vrot.lane.b32.xlu0 %v1530, 106
      %v1588 = vpop.permute.xlu0 %1587
      %1590 = vst.msk [vmem:[%s225 + $0x8] sm:$0xff] %vm1548, %v1588
      %1591 = vrot.lane.b32.xlu0 %v1530, 104
      %v1592 = vpop.permute.xlu0 %1591
      %1594 = vst.msk [vmem:[%s225 + $0x8] sm:$0xff] %vm1553, %v1592
      %1595 = vrot.lane.b32.xlu0 %v1530, 102
      %v1596 = vpop.permute.xlu0 %1595
      %1598 = vst.msk [vmem:[%s225 + $0x8] sm:$0xff] %vm1558, %v1596
      %1600 = vrot.lane.b32.xlu0 %v1530, 100
      %v1601 = vpop.permute.xlu0 %1600
      %1602 = vrot.lane.b32.xlu0 %v1531, 100
      %v1603 = vpop.permute.xlu0 %1602
      %vm1604 = vcmask 818176
      %v1605 = vsel %vm1604, %v1601, %v1603
      %1607 = vst.msk [vmem:[%s225 + $0x8] sm:$0xff] %vm1563, %v1605
      %1608 = vrot.lane.b32.xlu0 %v1531, 98
      %v1609 = vpop.permute.xlu0 %1608
      %1611 = vst.msk [vmem:[%s225 + $0x8] sm:$0xff] %vm1573, %v1609
      %p1612 = scmp.lt.s32.totalorder %s17, 1
      %s1613 = scalar_select %p1612, %s17, 1
      %s1614 = smul.addr %s1613, 2
      %s1615 = smul.addr %s1614, 8
      %s1616 = scalar_lea.vmem %s5, %s1615
      // Predicated region
      $region41: #{quant_module_forward.3} parent=39 // pred_check
        %p1617 = pneg %p145
      $region42: #{quant_module_forward.3} parent=39 // pred_check_branch
        %1619 = sbr.rel (%p1617) target = $region44
      $region43: #{quant_module_forward.3} parent=39 // pred_region
        _
      $region44: #{quant_module_forward.3} parent=39 // pred_fallthru
        _
    $region40: #{quant_module_forward.3} parent=5 // pred_fallthru
      _
    %p1620 = scmp.le.s32.totalorder 2, %s12
    // Predicated region
    $region45: #{quant_module_forward.3} parent=5 // pred_check
      %p1621 = pneg %p1620
    $region46: #{quant_module_forward.3} parent=5 // pred_check_branch
      %1623 = sbr.rel (%p1621) target = $region48
    $region47: #{quant_module_forward.3} parent=5 // pred_region
      %s1624 = ssub.s32 %s12, 2
      // Predicated region
      $region49: #{quant_module_forward.3} parent=47 // pred_check
        %p1625 = pneg %p151
      $region50: #{quant_module_forward.3} parent=47 // pred_check_branch
        %1627 = sbr.rel (%p1625) target = $region52
      $region51: #{quant_module_forward.3} parent=47 // pred_region
        %p1628 = scmp.lt.s32.totalorder %s18, 1
        %s1629 = scalar_select %p1628, %s18, 1
        %s1630 = smul.addr %s1629, 2
        %s1631 = smul.addr %s1630, 8
        %s1632 = scalar_lea.vmem %s5, %s1631
      $region52: #{quant_module_forward.3} parent=47 // pred_fallthru
        _
    $region48: #{quant_module_forward.3} parent=5 // pred_fallthru
      _
  $region6: #{quant_module_forward.3} parent=0 // loop_footer
    %s16 = sadd.s32 1, %s12
  $region7: #{quant_module_forward.3} parent=0 // loop_footer_branch
    %11 = sbr.rel target = $region3
  $region8: #{quant_module_forward.3} parent=0 // loop_exit
    _

</llo_original>
